<compile_context>
chip_gen: v7x
topology: tpu7x:2x2x1
jax: 0.10.0
libtpu: 0.0.40
codegen_flags: <defaults>
</compile_context>

<pallas_src>
import functools

import jax
import jax.numpy as jnp
from jax.experimental import pallas as pl
from jax.experimental.pallas import tpu as pltpu


BRANCH_LANES = 128  # one vreg lane-group per conv branch (roll-tree layout)


# -----------------------------------------------------------------------------
# Pallas kernel: one batch tile (TM rows) per grid step, processed in SUB-row
# sub-chunks so vreg live ranges stay bounded even for large TM.
#   x_ref     (TM, L*E)              bf16  flattened embeddings
#   wconv_ref (L*E, Ntot)            bf16  packed banded conv weights
#   bconv_ref (1, Ntot | n_br*K)     f32   conv biases (tiled per time slot)
#   w1_ref    (n_br*128 | n_br*K, H) f32   fc1 weight (zero-embedded for roll)
#   b1_ref    (1, H)                 f32
#   w2_ref    (H, 8)                 f32   fc2 weight zero-padded to 8 lanes
#   b2_ref    (1, 8)                 f32
#   out_ref   (TM, 8)                f32   logits live in lanes [0, 5)
# -----------------------------------------------------------------------------
def conv_clf_kernel(x_ref, wconv_ref, bconv_ref, w1_ref, b1_ref, w2_ref, b2_ref,
                    out_ref, *, sub, n_sub, K, n_branches, branch_lanes,
                    use_roll, col_groups):
    def sub_body(r):
        row = pl.multiple_of(r * sub, sub)
        x = x_ref[pl.ds(row, sub), :]                                  # (SUB, L*E) bf16
        # All conv branches + all time slots in one MXU matmul (f32 acc).
        y = jnp.dot(x, wconv_ref[...], preferred_element_type=jnp.float32)

        if use_roll:
            # Per branch: 128-lane-aligned column group -> XLU roll tree max
            # over time, then bias + ReLU, then accumulate the fc1 product
            # (fc1 rows outside lanes 0..K-1 of each group are zero).
            h = jnp.zeros((sub, w1_ref.shape[1]), jnp.float32)
            for b in range(n_branches):
                lo = b * branch_lanes
                yb = y[:, lo:lo + branch_lanes]                        # (SUB, 128)
                shift = branch_lanes // 2
                while shift >= K:
                    yb = jnp.maximum(yb, pltpu.roll(yb, shift=shift, axis=1))
                    shift //= 2
                fb = jnp.maximum(yb + bconv_ref[:, lo:lo + branch_lanes], 0.0)
                h = h + jnp.dot(fb, w1_ref[lo:lo + branch_lanes, :],
                                preferred_element_type=jnp.float32)
        else:
            # Fallback layout (when a branch doesn't fit one 128-lane group):
            # static 8-lane slices + jnp.maximum, as in v1.
            feats = []
            for off, l_out in col_groups:
                m = y[:, off:off + K]
                for t in range(1, l_out):
                    m = jnp.maximum(m, y[:, off + t * K: off + (t + 1) * K])
                feats.append(m)
            f = jnp.maximum(jnp.concatenate(feats, axis=1) + bconv_ref[...], 0.0)
            h = jnp.dot(f, w1_ref[...], preferred_element_type=jnp.float32)

        h = jnp.maximum(h + b1_ref[...], 0.0)
        logits = jnp.dot(h, w2_ref[...], preferred_element_type=jnp.float32) + b2_ref[...]
        out_ref[pl.ds(row, sub), :] = logits.astype(out_ref.dtype)

    if n_sub == 1:
        sub_body(0)
    else:
        def body(r, carry):
            sub_body(r)
            return carry
        jax.lax.fori_loop(0, n_sub, body, 0, unroll=True)


def _round_up(x, m):
    return ((x + m - 1) // m) * m


def _pack_conv_weights_roll(params, kernel_sizes, L, E, K, branch_lanes):
    """Each branch folded into a banded (L*E, 128) block; padding time columns
    duplicate time-slot 0 so the max over time is unchanged."""
    t_pad = branch_lanes // K
    blocks, biases = [], []
    for ks in kernel_sizes:
        l_out = L - ks + 1
        w = params[f"conv{ks}_w"]                      # (ks*E, K)
        wb = jnp.zeros((L * E, branch_lanes), dtype=w.dtype)
        for t in range(t_pad):
            tt = t if t < l_out else 0                 # duplicate, NOT zero-pad
            wb = wb.at[tt * E:(tt + ks) * E, t * K:(t + 1) * K].set(w)
        blocks.append(wb)
        biases.append(jnp.tile(params[f"conv{ks}_b"], (1, t_pad)))
    return jnp.concatenate(blocks, axis=1), jnp.concatenate(biases, axis=1)


def _pack_fc1_roll(fc1_w, n_br, K, branch_lanes):
    """Zero-embed fc1 rows at lanes {0..K-1} of each 128-lane branch group."""
    H = fc1_w.shape[1]
    w = jnp.zeros((n_br * branch_lanes, H), fc1_w.dtype)
    for b in range(n_br):
        w = w.at[b * branch_lanes:b * branch_lanes + K, :].set(
            fc1_w[b * K:(b + 1) * K, :])
    return w


def _pack_conv_weights_dense(params, kernel_sizes, L, E, K):
    """Fallback: compact banded packing (no per-branch lane padding)."""
    blocks, col_groups, off = [], [], 0
    for ks in kernel_sizes:
        l_out = L - ks + 1
        w = params[f"conv{ks}_w"]
        wb = jnp.zeros((L * E, l_out * K), dtype=w.dtype)
        for t in range(l_out):
            wb = wb.at[t * E:(t + ks) * E, t * K:(t + 1) * K].set(w)
        blocks.append(wb)
        col_groups.append((off, l_out))
        off += l_out * K
    wconv = jnp.concatenate(blocks, axis=1)
    bconv = jnp.concatenate([params[f"conv{ks}_b"] for ks in kernel_sizes], axis=1)
    return wconv, bconv, tuple(col_groups)


def conv_classifier_forward(input_ids, params, kernel_sizes, *,
                            block_batch=512, sub_rows=128):
    emb_table = params["embedding"]
    B, L = input_ids.shape
    E = emb_table.shape[1]
    K = params[f"conv{kernel_sizes[0]}_b"].shape[1]
    H = params["fc1_w"].shape[1]
    NC = params["fc2_w"].shape[1]
    NPAD = _round_up(NC, 8)        # 8-lane padded logits (tiny writeback)

    # ---- batch tiling --------------------------------------------------------
    TM = _round_up(min(block_batch, max(B, 1)), 8)
    if B > 8:                      # keep >= 2 grid steps (v7x megacore)
        TM = min(TM, _round_up((B + 1) // 2, 8))
    if TM > sub_rows:
        SUB = sub_rows
        TM = _round_up(TM, SUB)
    else:
        SUB = TM
    n_sub = TM // SUB
    Bp = _round_up(B, TM)
    ids = input_ids if Bp == B else jnp.pad(input_ids, ((0, Bp - B), (0, 0)))

    # Embedding lookup (gather) stays in XLA glue; activations DMA'd as bf16.
    # TODO(synk): candidate — fuse the gather into the kernel with a resident
    # bf16 table to remove one HBM pass over the activation slab.
    # nn.Dropout is identity at inference time; no Pallas op emitted.
    emb = emb_table[ids].astype(jnp.bfloat16)          # (Bp, L, E)
    x2 = emb.reshape(Bp, L * E)                        # lane-dense slab

    # ---- weight packing ------------------------------------------------------
    n_br = len(kernel_sizes)
    t_pad = BRANCH_LANES // K if BRANCH_LANES % K == 0 else 0
    use_roll = (t_pad > 0 and (t_pad & (t_pad - 1)) == 0
                and all(1 <= L - ks + 1 <= t_pad for ks in kernel_sizes))
    if use_roll:
        wconv_f32, bconv = _pack_conv_weights_roll(
            params, kernel_sizes, L, E, K, BRANCH_LANES)
        w1 = _pack_fc1_roll(params["fc1_w"], n_br, K, BRANCH_LANES)
        col_groups = ()
    else:
        wconv_f32, bconv, col_groups = _pack_conv_weights_dense(
            params, kernel_sizes, L, E, K)
        w1 = params["fc1_w"]
    wconv = wconv_f32.astype(jnp.bfloat16)
    ntot = wconv.shape[1]

    # fc2 padded to 8 output lanes; wrapper slices [:, :NC].
    w2p = jnp.zeros((H, NPAD), jnp.float32).at[:, :NC].set(params["fc2_w"])
    b2p = jnp.zeros((1, NPAD), jnp.float32).at[:, :NC].set(params["fc2_b"])

    kernel = functools.partial(
        conv_clf_kernel, sub=SUB, n_sub=n_sub, K=K, n_branches=n_br,
        branch_lanes=BRANCH_LANES, use_roll=use_roll, col_groups=col_groups)

    out = pl.pallas_call(
        kernel,
        out_shape=jax.ShapeDtypeStruct((Bp, NPAD), jnp.float32),
        grid=(Bp // TM,),
        in_specs=[
            pl.BlockSpec((TM, L * E), lambda i: (i, 0)),             # activations
            pl.BlockSpec((L * E, ntot), lambda i: (0, 0)),           # packed conv W
            pl.BlockSpec(bconv.shape, lambda i: (0, 0)),             # conv bias
            pl.BlockSpec(w1.shape, lambda i: (0, 0)),                # fc1 W
            pl.BlockSpec(params["fc1_b"].shape, lambda i: (0, 0)),   # fc1 b
            pl.BlockSpec((H, NPAD), lambda i: (0, 0)),               # fc2 W (padded)
            pl.BlockSpec((1, NPAD), lambda i: (0, 0)),               # fc2 b (padded)
        ],
        out_specs=pl.BlockSpec((TM, NPAD), lambda i: (i, 0)),
        compiler_params=pltpu.CompilerParams(dimension_semantics=("parallel",)),
    )(x2, wconv, bconv, w1, params["fc1_b"], w2p, b2p)

    return out[:B, :NC]


def init_params(key, vocab_size, embedding_dim, kernel_depth, kernel_sizes,
                hidden_dim, num_class=5):
    n_conv = len(kernel_sizes)
    keys = jax.random.split(key, 1 + 2 * n_conv + 4)
    p = {}
    p["embedding"] = 0.02 * jax.random.normal(
        keys[0], (vocab_size, embedding_dim), jnp.float32)
    for i, ks in enumerate(kernel_sizes):
        # PyTorch Conv1d weight layout: (out_ch=K, in_ch=E, ks).
        w_torch = 0.05 * jax.random.normal(
            keys[1 + 2 * i], (kernel_depth, embedding_dim, ks), jnp.float32)
        # Matmul layout matching the im2col index (j*E + e): (ks*E, K).
        p[f"conv{ks}_w"] = jnp.transpose(w_torch, (2, 1, 0)).reshape(
            ks * embedding_dim, kernel_depth)
        p[f"conv{ks}_b"] = 0.01 * jax.random.normal(
            keys[2 + 2 * i], (1, kernel_depth), jnp.float32)
    p["fc1_w"] = 0.05 * jax.random.normal(
        keys[1 + 2 * n_conv], (n_conv * kernel_depth, hidden_dim), jnp.float32)
    p["fc1_b"] = 0.01 * jax.random.normal(
        keys[2 + 2 * n_conv], (1, hidden_dim), jnp.float32)
    p["fc2_w"] = 0.05 * jax.random.normal(
        keys[3 + 2 * n_conv], (hidden_dim, num_class), jnp.float32)
    p["fc2_b"] = 0.01 * jax.random.normal(
        keys[4 + 2 * n_conv], (1, num_class), jnp.float32)
    return p


def _unfold(emb, ks):
    """im2col for a 1-D conv: (B, L, E) -> (B, L-ks+1, ks*E)."""
    B, L, E = emb.shape
    l_out = L - ks + 1
    windows = jnp.stack([emb[:, j:j + l_out, :] for j in range(ks)], axis=2)
    return windows.reshape(B, l_out, ks * E)


def reference_forward(input_ids, params, kernel_sizes):
    """Pure-JAX reference of the PyTorch forward (eval mode), mirroring the
    kernel's mixed precision (bf16 activations/conv weights, f32 accumulate)."""
    emb = params["embedding"][input_ids].astype(jnp.bfloat16)
    feats = []
    for ks in kernel_sizes:
        x = _unfold(emb, ks)
        w = params[f"conv{ks}_w"].astype(jnp.bfloat16)
        y = jnp.einsum("blk,kc->blc", x, w,
                       preferred_element_type=jnp.float32) + params[f"conv{ks}_b"]
        y = jnp.maximum(y, 0.0)
        feats.append(jnp.max(y, axis=1))
    f = jnp.concatenate(feats, axis=1)
    h = jnp.maximum(f @ params["fc1_w"] + params["fc1_b"], 0.0)
    return h @ params["fc2_w"] + params["fc2_b"]


if __name__ == "__main__":
    # Small hyperparameters consistent with the module's `opt`.
    vocab_size = 30522
    embedding_dim = 32
    kernel_depth = 8
    kernel_sizes = (3, 4, 5)
    hidden_dim = 32
    batch_size, max_length = 16, 16

    key = jax.random.PRNGKey(0)
    k_param, k_ids = jax.random.split(key)
    params = init_params(k_param, vocab_size, embedding_dim, kernel_depth,
                         kernel_sizes, hidden_dim)
    input_ids = jax.random.randint(k_ids, (batch_size, max_length), 0, vocab_size,
                                   dtype=jnp.int32)

    # Default tiling heuristic yields TM=8 -> a 2-step grid even at B=16.
    logits = conv_classifier_forward(input_ids, params, kernel_sizes)
    logits = jax.block_until_ready(logits)

    ref = reference_forward(input_ids, params, kernel_sizes)
    assert logits.shape == (batch_size, 5)
    assert jnp.allclose(logits, ref, atol=1e-4, rtol=1e-4)
    print("KERNEL_OK")
</pallas_src>

<mosaic_0001>
module attributes {stable_mosaic.version = 11 : i64} {
  func.func @conv_clf_kernel(%arg0: i32, %arg1: memref<8x512xbf16, #tpu.memory_space<vmem>>, %arg2: memref<512x384xbf16, #tpu.memory_space<vmem>>, %arg3: memref<1x384xf32, #tpu.memory_space<vmem>>, %arg4: memref<384x32xf32, #tpu.memory_space<vmem>>, %arg5: memref<1x32xf32, #tpu.memory_space<vmem>>, %arg6: memref<32x8xf32, #tpu.memory_space<vmem>>, %arg7: memref<1x8xf32, #tpu.memory_space<vmem>>, %arg8: memref<8x8xf32, #tpu.memory_space<vmem>>) attributes {dimension_semantics = [#tpu.dimension_semantics<parallel>], iteration_bounds = array<i64: 2>, scalar_prefetch = 0 : i64, scratch_operands = 0 : i64, tpu.core_type = #tpu.core_type<tc>, window_params = [{transform_indices = @transform_0, window_bounds = array<i64: 8, 512>}, {pipeline_mode = #tpu.pipeline_mode<synchronous>, transform_indices = @transform_1, window_bounds = array<i64: 512, 384>}, {pipeline_mode = #tpu.pipeline_mode<synchronous>, transform_indices = @transform_2, window_bounds = array<i64: 1, 384>}, {pipeline_mode = #tpu.pipeline_mode<synchronous>, transform_indices = @transform_3, window_bounds = array<i64: 384, 32>}, {pipeline_mode = #tpu.pipeline_mode<synchronous>, transform_indices = @transform_4, window_bounds = array<i64: 1, 32>}, {pipeline_mode = #tpu.pipeline_mode<synchronous>, transform_indices = @transform_5, window_bounds = array<i64: 32, 8>}, {pipeline_mode = #tpu.pipeline_mode<synchronous>, transform_indices = @transform_6, window_bounds = array<i64: 1, 8>}, {transform_indices = @transform_7, window_bounds = array<i64: 8, 8>}]} {
    %c0_i32 = arith.constant 0 : i32
    %0 = tpu.assume_multiple %c0_i32, 8 : i32
    %1 = arith.index_cast %0 : i32 to index
    %c0 = arith.constant 0 : index
    %2 = vector.load %arg1[%1, %c0] : memref<8x512xbf16, #tpu.memory_space<vmem>>, vector<8x512xbf16>
    %c0_0 = arith.constant 0 : index
    %c0_1 = arith.constant 0 : index
    %3 = vector.load %arg2[%c0_0, %c0_1] : memref<512x384xbf16, #tpu.memory_space<vmem>>, vector<512x384xbf16>
    %cst = arith.constant dense<0.000000e+00> : vector<8x384xf32>
    %4 = tpu.matmul %2, %3, %cst {dimension_numbers = #tpu.dot_dimension_numbers<[1], [0], [0], [1], [0, 0, 1, 1], [], []>} : vector<8x512xbf16>, vector<512x384xbf16>, vector<8x384xf32> -> vector<8x384xf32>
    %cst_2 = arith.constant 0.000000e+00 : f32
    %5 = vector.broadcast %cst_2 : f32 to vector<8x32xf32>
    %6 = vector.extract_strided_slice %4 {offsets = [0, 0], sizes = [8, 128], strides = [1, 1]} : vector<8x384xf32> to vector<8x128xf32>
    %c64_i32 = arith.constant 64 : i32
    %7 = tpu.dynamic_rotate %6 by %c64_i32 dim 1 : vector<8x128xf32>, i32 -> vector<8x128xf32>
    %8 = arith.maximumf %6, %7 : vector<8x128xf32>
    %c32_i32 = arith.constant 32 : i32
    %9 = tpu.dynamic_rotate %8 by %c32_i32 dim 1 : vector<8x128xf32>, i32 -> vector<8x128xf32>
    %10 = arith.maximumf %8, %9 : vector<8x128xf32>
    %c16_i32 = arith.constant 16 : i32
    %11 = tpu.dynamic_rotate %10 by %c16_i32 dim 1 : vector<8x128xf32>, i32 -> vector<8x128xf32>
    %12 = arith.maximumf %10, %11 : vector<8x128xf32>
    %c8_i32 = arith.constant 8 : i32
    %13 = tpu.dynamic_rotate %12 by %c8_i32 dim 1 : vector<8x128xf32>, i32 -> vector<8x128xf32>
    %14 = arith.maximumf %12, %13 : vector<8x128xf32>
    %c0_3 = arith.constant 0 : index
    %c0_4 = arith.constant 0 : index
    %15 = vector.load %arg3[%c0_3, %c0_4] : memref<1x384xf32, #tpu.memory_space<vmem>>, vector<1x128xf32>
    %16 = vector.broadcast %15 : vector<1x128xf32> to vector<8x128xf32>
    %17 = arith.addf %14, %16 : vector<8x128xf32>
    %cst_5 = arith.constant 0.000000e+00 : f32
    %18 = vector.broadcast %cst_5 : f32 to vector<8x128xf32>
    %19 = arith.maximumf %17, %18 : vector<8x128xf32>
    %c0_6 = arith.constant 0 : index
    %c0_7 = arith.constant 0 : index
    %20 = vector.load %arg4[%c0_6, %c0_7] : memref<384x32xf32, #tpu.memory_space<vmem>>, vector<128x32xf32>
    %cst_8 = arith.constant dense<0.000000e+00> : vector<8x32xf32>
    %21 = tpu.matmul %19, %20, %cst_8 {dimension_numbers = #tpu.dot_dimension_numbers<[1], [0], [0], [1], [0, 0, 1, 1], [], []>} : vector<8x128xf32>, vector<128x32xf32>, vector<8x32xf32> -> vector<8x32xf32>
    %22 = arith.addf %5, %21 : vector<8x32xf32>
    %23 = vector.extract_strided_slice %4 {offsets = [0, 128], sizes = [8, 128], strides = [1, 1]} : vector<8x384xf32> to vector<8x128xf32>
    %c64_i32_9 = arith.constant 64 : i32
    %24 = tpu.dynamic_rotate %23 by %c64_i32_9 dim 1 : vector<8x128xf32>, i32 -> vector<8x128xf32>
    %25 = arith.maximumf %23, %24 : vector<8x128xf32>
    %c32_i32_10 = arith.constant 32 : i32
    %26 = tpu.dynamic_rotate %25 by %c32_i32_10 dim 1 : vector<8x128xf32>, i32 -> vector<8x128xf32>
    %27 = arith.maximumf %25, %26 : vector<8x128xf32>
    %c16_i32_11 = arith.constant 16 : i32
    %28 = tpu.dynamic_rotate %27 by %c16_i32_11 dim 1 : vector<8x128xf32>, i32 -> vector<8x128xf32>
    %29 = arith.maximumf %27, %28 : vector<8x128xf32>
    %c8_i32_12 = arith.constant 8 : i32
    %30 = tpu.dynamic_rotate %29 by %c8_i32_12 dim 1 : vector<8x128xf32>, i32 -> vector<8x128xf32>
    %31 = arith.maximumf %29, %30 : vector<8x128xf32>
    %c0_13 = arith.constant 0 : index
    %c128 = arith.constant 128 : index
    %32 = vector.load %arg3[%c0_13, %c128] : memref<1x384xf32, #tpu.memory_space<vmem>>, vector<1x128xf32>
    %33 = vector.broadcast %32 : vector<1x128xf32> to vector<8x128xf32>
    %34 = arith.addf %31, %33 : vector<8x128xf32>
    %cst_14 = arith.constant 0.000000e+00 : f32
    %35 = vector.broadcast %cst_14 : f32 to vector<8x128xf32>
    %36 = arith.maximumf %34, %35 : vector<8x128xf32>
    %c128_15 = arith.constant 128 : index
    %c0_16 = arith.constant 0 : index
    %37 = vector.load %arg4[%c128_15, %c0_16] : memref<384x32xf32, #tpu.memory_space<vmem>>, vector<128x32xf32>
    %cst_17 = arith.constant dense<0.000000e+00> : vector<8x32xf32>
    %38 = tpu.matmul %36, %37, %cst_17 {dimension_numbers = #tpu.dot_dimension_numbers<[1], [0], [0], [1], [0, 0, 1, 1], [], []>} : vector<8x128xf32>, vector<128x32xf32>, vector<8x32xf32> -> vector<8x32xf32>
    %39 = arith.addf %22, %38 : vector<8x32xf32>
    %40 = vector.extract_strided_slice %4 {offsets = [0, 256], sizes = [8, 128], strides = [1, 1]} : vector<8x384xf32> to vector<8x128xf32>
    %c64_i32_18 = arith.constant 64 : i32
    %41 = tpu.dynamic_rotate %40 by %c64_i32_18 dim 1 : vector<8x128xf32>, i32 -> vector<8x128xf32>
    %42 = arith.maximumf %40, %41 : vector<8x128xf32>
    %c32_i32_19 = arith.constant 32 : i32
    %43 = tpu.dynamic_rotate %42 by %c32_i32_19 dim 1 : vector<8x128xf32>, i32 -> vector<8x128xf32>
    %44 = arith.maximumf %42, %43 : vector<8x128xf32>
    %c16_i32_20 = arith.constant 16 : i32
    %45 = tpu.dynamic_rotate %44 by %c16_i32_20 dim 1 : vector<8x128xf32>, i32 -> vector<8x128xf32>
    %46 = arith.maximumf %44, %45 : vector<8x128xf32>
    %c8_i32_21 = arith.constant 8 : i32
    %47 = tpu.dynamic_rotate %46 by %c8_i32_21 dim 1 : vector<8x128xf32>, i32 -> vector<8x128xf32>
    %48 = arith.maximumf %46, %47 : vector<8x128xf32>
    %c0_22 = arith.constant 0 : index
    %c256 = arith.constant 256 : index
    %49 = vector.load %arg3[%c0_22, %c256] : memref<1x384xf32, #tpu.memory_space<vmem>>, vector<1x128xf32>
    %50 = vector.broadcast %49 : vector<1x128xf32> to vector<8x128xf32>
    %51 = arith.addf %48, %50 : vector<8x128xf32>
    %cst_23 = arith.constant 0.000000e+00 : f32
    %52 = vector.broadcast %cst_23 : f32 to vector<8x128xf32>
    %53 = arith.maximumf %51, %52 : vector<8x128xf32>
    %c256_24 = arith.constant 256 : index
    %c0_25 = arith.constant 0 : index
    %54 = vector.load %arg4[%c256_24, %c0_25] : memref<384x32xf32, #tpu.memory_space<vmem>>, vector<128x32xf32>
    %cst_26 = arith.constant dense<0.000000e+00> : vector<8x32xf32>
    %55 = tpu.matmul %53, %54, %cst_26 {dimension_numbers = #tpu.dot_dimension_numbers<[1], [0], [0], [1], [0, 0, 1, 1], [], []>} : vector<8x128xf32>, vector<128x32xf32>, vector<8x32xf32> -> vector<8x32xf32>
    %56 = arith.addf %39, %55 : vector<8x32xf32>
    %c0_27 = arith.constant 0 : index
    %c0_28 = arith.constant 0 : index
    %57 = vector.load %arg5[%c0_27, %c0_28] : memref<1x32xf32, #tpu.memory_space<vmem>>, vector<1x32xf32>
    %58 = vector.broadcast %57 : vector<1x32xf32> to vector<8x32xf32>
    %59 = arith.addf %56, %58 : vector<8x32xf32>
    %cst_29 = arith.constant 0.000000e+00 : f32
    %60 = vector.broadcast %cst_29 : f32 to vector<8x32xf32>
    %61 = arith.maximumf %59, %60 : vector<8x32xf32>
    %c0_30 = arith.constant 0 : index
    %c0_31 = arith.constant 0 : index
    %62 = vector.load %arg6[%c0_30, %c0_31] : memref<32x8xf32, #tpu.memory_space<vmem>>, vector<32x8xf32>
    %cst_32 = arith.constant dense<0.000000e+00> : vector<8x8xf32>
    %63 = tpu.matmul %61, %62, %cst_32 {dimension_numbers = #tpu.dot_dimension_numbers<[1], [0], [0], [1], [0, 0, 1, 1], [], []>} : vector<8x32xf32>, vector<32x8xf32>, vector<8x8xf32> -> vector<8x8xf32>
    %c0_33 = arith.constant 0 : index
    %c0_34 = arith.constant 0 : index
    %64 = vector.load %arg7[%c0_33, %c0_34] : memref<1x8xf32, #tpu.memory_space<vmem>>, vector<1x8xf32>
    %65 = vector.broadcast %64 : vector<1x8xf32> to vector<8x8xf32>
    %66 = arith.addf %63, %65 : vector<8x8xf32>
    %67 = arith.index_cast %0 : i32 to index
    %c0_35 = arith.constant 0 : index
    %68 = vector.load %arg8[%67, %c0_35] : memref<8x8xf32, #tpu.memory_space<vmem>>, vector<8x8xf32>
    tpu.vector_store %arg8[%67, %c0_35], %66 {strides = array<i32>} : memref<8x8xf32, #tpu.memory_space<vmem>>, vector<8x8xf32>,
    return
  }
  func.func @transform_0(%arg0: i32) -> (i32, i32) {
    %c0_i32 = arith.constant 0 : i32
    %c0_i32_0 = arith.constant 0 : i32
    return %arg0, %c0_i32 : i32, i32
  }
  func.func @transform_1(%arg0: i32) -> (i32, i32) {
    %c0_i32 = arith.constant 0 : i32
    %c0_i32_0 = arith.constant 0 : i32
    %c0_i32_1 = arith.constant 0 : i32
    return %c0_i32, %c0_i32_0 : i32, i32
  }
  func.func @transform_2(%arg0: i32) -> (i32, i32) {
    %c0_i32 = arith.constant 0 : i32
    %c0_i32_0 = arith.constant 0 : i32
    %c0_i32_1 = arith.constant 0 : i32
    return %c0_i32, %c0_i32_0 : i32, i32
  }
  func.func @transform_3(%arg0: i32) -> (i32, i32) {
    %c0_i32 = arith.constant 0 : i32
    %c0_i32_0 = arith.constant 0 : i32
    %c0_i32_1 = arith.constant 0 : i32
    return %c0_i32, %c0_i32_0 : i32, i32
  }
  func.func @transform_4(%arg0: i32) -> (i32, i32) {
    %c0_i32 = arith.constant 0 : i32
    %c0_i32_0 = arith.constant 0 : i32
    %c0_i32_1 = arith.constant 0 : i32
    return %c0_i32, %c0_i32_0 : i32, i32
  }
  func.func @transform_5(%arg0: i32) -> (i32, i32) {
    %c0_i32 = arith.constant 0 : i32
    %c0_i32_0 = arith.constant 0 : i32
    %c0_i32_1 = arith.constant 0 : i32
    return %c0_i32, %c0_i32_0 : i32, i32
  }
  func.func @transform_6(%arg0: i32) -> (i32, i32) {
    %c0_i32 = arith.constant 0 : i32
    %c0_i32_0 = arith.constant 0 : i32
    %c0_i32_1 = arith.constant 0 : i32
    return %c0_i32, %c0_i32_0 : i32, i32
  }
  func.func @transform_7(%arg0: i32) -> (i32, i32) {
    %c0_i32 = arith.constant 0 : i32
    %c0_i32_0 = arith.constant 0 : i32
    return %arg0, %c0_i32 : i32, i32
  }
}

</mosaic_0001>

<llo_original>
// kernel: tpu_custom_call.1
$region0: #{tpu_custom_call.1}
  #allocation0 [shape = 'u32[]', space=smem, size = 0x4, offset = 0x4, fixed_abs, tag = 'smem constant byte address 0x4 - core index']
  #allocation1 [shape = 'u32[144,128]{1,0:T(1,128)}', space=vmem, size = 0x12000, scoped, tag = 'internal scratch']
  %s0 = inlined_call_operand.vmem [shape: bf16[16,512], index: 0, kind: input, shape index: {}]
  %s1 = inlined_call_operand.hbm [shape: bf16[512,384], index: 1, kind: input, shape index: {}]
  %s2 = inlined_call_operand.vmem [shape: f32[1,384], index: 2, kind: input, shape index: {}]
  %s3 = inlined_call_operand.vmem [shape: f32[384,32], index: 3, kind: input, shape index: {}]
  %s4 = inlined_call_operand.vmem [shape: f32[1,32], index: 4, kind: input, shape index: {}]
  %s5 = inlined_call_operand.vmem [shape: f32[32,8], index: 5, kind: input, shape index: {}]
  %s6 = inlined_call_operand.vmem [shape: f32[1,8], index: 6, kind: input, shape index: {}]
  %s7 = inlined_call_operand.vmem [shape: f32[16,8], index: 7, kind: output, shape index: {}]
  %s8 = sld [smem:[#allocation0]]
  $region65: #{tpu_custom_call.1} parent=0
    _
  %s10 = ssub.s32 1, %s8
  %s11 = scalar_select 0, %s10, %s8
  $region1: #{tpu_custom_call.1} parent=0
    #allocation2 [shape = 'u8[393216]{0}', space=vmem, size = 0x60000, scoped, tag = 'input window, operand 1, single buffered']
    #allocation3 [shape = 's32[2]{0}', space=sflag, size = 0x8, scoped, tag = 'scoped memory for tpu_custom_call.1']
    %12 = vsyncpa [#allocation3], 0
    loop: start=0, step=1, limit=4
    $region2: #{tpu_custom_call.1} parent=1 // loop_pre_header
      _
    $region3: #{tpu_custom_call.1} parent=1 // loop_header
      %s14 = sphi 0, %s18
      %p15 = scmp.ge.s32.totalorder %s14, 4
      %s24 = sphi 0, %s26
      %s27 = sphi 0, %s24
      %s28 = sphi 0, %s27
      %s44 = sphi 0, %s28
      %s48 = sphi 0, %s48
      %s50 = sphi 0, %s48
      %s51 = sphi 0, %s50
      %s65 = sphi 0, %s51
      %s69 = sphi 0, %s69
      %s71 = sphi 0, %s69
      %s72 = sphi 0, %s71
      %s86 = sphi 0, %s72
      %s90 = sphi 0, %s90
      %s92 = sphi 0, %s90
      %s93 = sphi 0, %s92
      %s107 = sphi 0, %s93
      %s111 = sphi 0, %s111
      %s113 = sphi 0, %s111
      %s114 = sphi 0, %s113
      %s128 = sphi 0, %s114
      %s132 = sphi 0, %s132
      %s134 = sphi 0, %s132
      %s135 = sphi 0, %s134
      %s149 = sphi 0, %s135
      %s153 = sphi 0, %s153
      %s155 = sphi 0, %s153
      %s156 = sphi 0, %s155
      %s170 = sphi 0, %s156
      %s176 = sphi 0, %s178
      %s179 = sphi 0, %s176
      %s180 = sphi 0, %s179
      %s196 = sphi 0, %s180
    $region4: #{tpu_custom_call.1} parent=1 // loop_header_branch
      %17 = sbr.rel (%p15) target = $region8
    $region5: #{tpu_custom_call.1} parent=1 // loop_body
      %s19 = ssub.s32 %s14, 1
      %s20 = ssub.s32 %s14, 2
      %s21 = sadd.s32 %s14, 1
      %s22 = ssub.s32 %s14, %s21
      %p23 = scmp.eq.s32.totalorder %s22, 0
      %s25 = sadd.s32 %s24, 1
      %s26 = scalar_select %p23, %s24, %s25
      %p29 = pneg %p23
      %p30 = scmp.eq.s32.totalorder %s14, 1
      %p31 = por %p29, %p30
      %p32 = scmp.ne.s32.totalorder %s24, %s27
      %p33 = scmp.eq.s32.totalorder %s14, 0
      %p34 = por %p32, %p33
      %p35 = scmp.ne.s32.totalorder %s24, %s27
      %p36 = scmp.eq.s32.totalorder %s19, 1
      %p37 = por %p35, %p36
      %p38 = scmp.ne.s32.totalorder %s27, %s28
      %p39 = scmp.eq.s32.totalorder %s19, 0
      %p40 = por %p38, %p39
      %p41 = scmp.ne.s32.totalorder %s27, %s28
      %p42 = scmp.eq.s32.totalorder %s20, 1
      %p43 = por %p41, %p42
      %p45 = scmp.ne.s32.totalorder %s28, %s44
      %p46 = scmp.eq.s32.totalorder %s20, 0
      %p47 = por %p45, %p46
      %s49 = sadd.s32 %s48, 1
      %p52 = scmp.eq.s32.totalorder %s14, 1
      %p53 = scmp.ne.s32.totalorder %s48, %s50
      %p54 = scmp.eq.s32.totalorder %s14, 0
      %p55 = por %p53, %p54
      %p56 = scmp.ne.s32.totalorder %s48, %s50
      %p57 = scmp.eq.s32.totalorder %s19, 1
      %p58 = por %p56, %p57
      %p59 = scmp.ne.s32.totalorder %s50, %s51
      %p60 = scmp.eq.s32.totalorder %s19, 0
      %p61 = por %p59, %p60
      %p62 = scmp.ne.s32.totalorder %s50, %s51
      %p63 = scmp.eq.s32.totalorder %s20, 1
      %p64 = por %p62, %p63
      %p66 = scmp.ne.s32.totalorder %s51, %s65
      %p67 = scmp.eq.s32.totalorder %s20, 0
      %p68 = por %p66, %p67
      %s70 = sadd.s32 %s69, 1
      %p73 = scmp.eq.s32.totalorder %s14, 1
      %p74 = scmp.ne.s32.totalorder %s69, %s71
      %p75 = scmp.eq.s32.totalorder %s14, 0
      %p76 = por %p74, %p75
      %p77 = scmp.ne.s32.totalorder %s69, %s71
      %p78 = scmp.eq.s32.totalorder %s19, 1
      %p79 = por %p77, %p78
      %p80 = scmp.ne.s32.totalorder %s71, %s72
      %p81 = scmp.eq.s32.totalorder %s19, 0
      %p82 = por %p80, %p81
      %p83 = scmp.ne.s32.totalorder %s71, %s72
      %p84 = scmp.eq.s32.totalorder %s20, 1
      %p85 = por %p83, %p84
      %p87 = scmp.ne.s32.totalorder %s72, %s86
      %p88 = scmp.eq.s32.totalorder %s20, 0
      %p89 = por %p87, %p88
      %s91 = sadd.s32 %s90, 1
      %p94 = scmp.eq.s32.totalorder %s14, 1
      %p95 = scmp.ne.s32.totalorder %s90, %s92
      %p96 = scmp.eq.s32.totalorder %s14, 0
      %p97 = por %p95, %p96
      %p98 = scmp.ne.s32.totalorder %s90, %s92
      %p99 = scmp.eq.s32.totalorder %s19, 1
      %p100 = por %p98, %p99
      %p101 = scmp.ne.s32.totalorder %s92, %s93
      %p102 = scmp.eq.s32.totalorder %s19, 0
      %p103 = por %p101, %p102
      %p104 = scmp.ne.s32.totalorder %s92, %s93
      %p105 = scmp.eq.s32.totalorder %s20, 1
      %p106 = por %p104, %p105
      %p108 = scmp.ne.s32.totalorder %s93, %s107
      %p109 = scmp.eq.s32.totalorder %s20, 0
      %p110 = por %p108, %p109
      %s112 = sadd.s32 %s111, 1
      %p115 = scmp.eq.s32.totalorder %s14, 1
      %p116 = scmp.ne.s32.totalorder %s111, %s113
      %p117 = scmp.eq.s32.totalorder %s14, 0
      %p118 = por %p116, %p117
      %p119 = scmp.ne.s32.totalorder %s111, %s113
      %p120 = scmp.eq.s32.totalorder %s19, 1
      %p121 = por %p119, %p120
      %p122 = scmp.ne.s32.totalorder %s113, %s114
      %p123 = scmp.eq.s32.totalorder %s19, 0
      %p124 = por %p122, %p123
      %p125 = scmp.ne.s32.totalorder %s113, %s114
      %p126 = scmp.eq.s32.totalorder %s20, 1
      %p127 = por %p125, %p126
      %p129 = scmp.ne.s32.totalorder %s114, %s128
      %p130 = scmp.eq.s32.totalorder %s20, 0
      %p131 = por %p129, %p130
      %s133 = sadd.s32 %s132, 1
      %p136 = scmp.eq.s32.totalorder %s14, 1
      %p137 = scmp.ne.s32.totalorder %s132, %s134
      %p138 = scmp.eq.s32.totalorder %s14, 0
      %p139 = por %p137, %p138
      %p140 = scmp.ne.s32.totalorder %s132, %s134
      %p141 = scmp.eq.s32.totalorder %s19, 1
      %p142 = por %p140, %p141
      %p143 = scmp.ne.s32.totalorder %s134, %s135
      %p144 = scmp.eq.s32.totalorder %s19, 0
      %p145 = por %p143, %p144
      %p146 = scmp.ne.s32.totalorder %s134, %s135
      %p147 = scmp.eq.s32.totalorder %s20, 1
      %p148 = por %p146, %p147
      %p150 = scmp.ne.s32.totalorder %s135, %s149
      %p151 = scmp.eq.s32.totalorder %s20, 0
      %p152 = por %p150, %p151
      %s154 = sadd.s32 %s153, 1
      %p157 = scmp.eq.s32.totalorder %s14, 1
      %p158 = scmp.ne.s32.totalorder %s153, %s155
      %p159 = scmp.eq.s32.totalorder %s14, 0
      %p160 = por %p158, %p159
      %p161 = scmp.ne.s32.totalorder %s153, %s155
      %p162 = scmp.eq.s32.totalorder %s19, 1
      %p163 = por %p161, %p162
      %p164 = scmp.ne.s32.totalorder %s155, %s156
      %p165 = scmp.eq.s32.totalorder %s19, 0
      %p166 = por %p164, %p165
      %p167 = scmp.ne.s32.totalorder %s155, %s156
      %p168 = scmp.eq.s32.totalorder %s20, 1
      %p169 = por %p167, %p168
      %p171 = scmp.ne.s32.totalorder %s156, %s170
      %p172 = scmp.eq.s32.totalorder %s20, 0
      %p173 = por %p171, %p172
      %s174 = ssub.s32 %s14, %s21
      %p175 = scmp.eq.s32.totalorder %s174, 0
      %s177 = sadd.s32 %s176, 1
      %s178 = scalar_select %p175, %s176, %s177
      %p181 = pneg %p175
      %p182 = scmp.eq.s32.totalorder %s14, 1
      %p183 = por %p181, %p182
      %p184 = scmp.ne.s32.totalorder %s176, %s179
      %p185 = scmp.eq.s32.totalorder %s14, 0
      %p186 = por %p184, %p185
      %p187 = scmp.ne.s32.totalorder %s176, %s179
      %p188 = scmp.eq.s32.totalorder %s19, 1
      %p189 = por %p187, %p188
      %p190 = scmp.ne.s32.totalorder %s179, %s180
      %p191 = scmp.eq.s32.totalorder %s19, 0
      %p192 = por %p190, %p191
      %p193 = scmp.ne.s32.totalorder %s179, %s180
      %p194 = scmp.eq.s32.totalorder %s20, 1
      %p195 = por %p193, %p194
      %p197 = scmp.ne.s32.totalorder %s180, %s196
      %p198 = scmp.eq.s32.totalorder %s20, 0
      %p199 = por %p197, %p198
      %p200 = scmp.le.s32.totalorder 1, %s14
      %p201 = scmp.lt.s32.totalorder %s14, 3
      %p202 = pnand %p200, %p201
      %p203 = pneg %p202
      // Predicated region
      $region9: #{tpu_custom_call.1} parent=5 // pred_check
        _
      $region10: #{tpu_custom_call.1} parent=5 // pred_check_branch
        %205 = sbr.rel (%p202) target = $region12
      $region11: #{tpu_custom_call.1} parent=5 // pred_region
        %s206 = ssub.s32 %s14, 1
        // Predicated region
        $region13: #{tpu_custom_call.1} parent=11 // pred_check
          %p207 = pneg %p61
        $region14: #{tpu_custom_call.1} parent=11 // pred_check_branch
          %209 = sbr.rel (%p207) target = $region16
        $region15: #{tpu_custom_call.1} parent=11 // pred_region
          %s211 = ssub.s32 12288, 12288
          %212 = vsyncadd [#allocation3], %s211
          %s213 = sshll.u32 [#allocation2], 4
          %s214 = int_to_ptr.vmem [resolvable:$true] %s213
          %219 = dma.hbm_to_vmem [thread:$0]  %s1, 12288, %s214, [#allocation3], 192, 192, 12
        $region16: #{tpu_custom_call.1} parent=11 // pred_fallthru
          _
        // Predicated region
        $region17: #{tpu_custom_call.1} parent=11 // pred_check
          %p220 = pneg %p82
        $region18: #{tpu_custom_call.1} parent=11 // pred_check_branch
          %222 = sbr.rel (%p220) target = $region20
        $region19: #{tpu_custom_call.1} parent=11 // pred_region
          _
        $region20: #{tpu_custom_call.1} parent=11 // pred_fallthru
          _
        // Predicated region
        $region21: #{tpu_custom_call.1} parent=11 // pred_check
          %p223 = pneg %p103
        $region22: #{tpu_custom_call.1} parent=11 // pred_check_branch
          %225 = sbr.rel (%p223) target = $region24
        $region23: #{tpu_custom_call.1} parent=11 // pred_region
          _
        $region24: #{tpu_custom_call.1} parent=11 // pred_fallthru
          _
        // Predicated region
        $region25: #{tpu_custom_call.1} parent=11 // pred_check
          %p226 = pneg %p124
        $region26: #{tpu_custom_call.1} parent=11 // pred_check_branch
          %228 = sbr.rel (%p226) target = $region28
        $region27: #{tpu_custom_call.1} parent=11 // pred_region
          _
        $region28: #{tpu_custom_call.1} parent=11 // pred_fallthru
          _
        // Predicated region
        $region29: #{tpu_custom_call.1} parent=11 // pred_check
          %p229 = pneg %p145
        $region30: #{tpu_custom_call.1} parent=11 // pred_check_branch
          %231 = sbr.rel (%p229) target = $region32
        $region31: #{tpu_custom_call.1} parent=11 // pred_region
          _
        $region32: #{tpu_custom_call.1} parent=11 // pred_fallthru
          _
        // Predicated region
        $region33: #{tpu_custom_call.1} parent=11 // pred_check
          %p232 = pneg %p166
        $region34: #{tpu_custom_call.1} parent=11 // pred_check_branch
          %234 = sbr.rel (%p232) target = $region36
        $region35: #{tpu_custom_call.1} parent=11 // pred_region
          _
        $region36: #{tpu_custom_call.1} parent=11 // pred_fallthru
          _
      $region12: #{tpu_custom_call.1} parent=5 // pred_fallthru
        _
      %p235 = scmp.lt.s32.totalorder %s14, 2
      // Predicated region
      $region37: #{tpu_custom_call.1} parent=5 // pred_check
        %p236 = pneg %p235
      $region38: #{tpu_custom_call.1} parent=5 // pred_check_branch
        %238 = sbr.rel (%p236) target = $region40
      $region39: #{tpu_custom_call.1} parent=5 // pred_region
        // Predicated region
        $region41: #{tpu_custom_call.1} parent=39 // pred_check
          %p239 = pneg %p34
        $region42: #{tpu_custom_call.1} parent=39 // pred_check_branch
          %241 = sbr.rel (%p239) target = $region44
        $region43: #{tpu_custom_call.1} parent=39 // pred_region
          %p242 = scmp.lt.s32.totalorder %s14, 1
          %s243 = scalar_select %p242, %s14, 1
          %s244 = smul.addr %s243, 4
          %s245 = smul.addr %s244, 4
          %s246 = scalar_lea.vmem %s0, %s245
        $region44: #{tpu_custom_call.1} parent=39 // pred_fallthru
          _
      $region40: #{tpu_custom_call.1} parent=5 // pred_fallthru
        _
      %p247 = scmp.le.s32.totalorder 1, %s14
      %p248 = scmp.lt.s32.totalorder %s14, 3
      %p249 = pnand %p247, %p248
      %p250 = pneg %p249
      // Predicated region
      $region45: #{tpu_custom_call.1} parent=5 // pred_check
        _
      $region46: #{tpu_custom_call.1} parent=5 // pred_check_branch
        %252 = sbr.rel (%p249) target = $region48
      $region47: #{tpu_custom_call.1} parent=5 // pred_region
        %s253 = ssub.s32 %s14, 1
        // Predicated region
        $region49: #{tpu_custom_call.1} parent=47 // pred_check
          %p254 = pneg %p61
        $region50: #{tpu_custom_call.1} parent=47 // pred_check_branch
          %256 = sbr.rel (%p254) target = $region52
        $region51: #{tpu_custom_call.1} parent=47 // pred_region
          %257 = dma.done [#allocation3], 12288
        $region52: #{tpu_custom_call.1} parent=47 // pred_fallthru
          _
        %p258 = scmp.lt.s32.totalorder %s19, 1
        %s259 = scalar_select %p258, %s19, 1
        %s260 = smul.addr %s259, 4
        %s261 = smul.addr %s260, 4
        %s262 = scalar_lea.vmem %s0, %s261
        %p263 = pneg %p40
        %p264 = pneg %p37
        %p265 = pneg %p61
        %p266 = pneg %p58
        %p267 = pneg %p82
        %p268 = pneg %p79
        %p269 = pneg %p103
        %p270 = pneg %p100
        %p271 = pneg %p124
        %p272 = pneg %p121
        %p273 = pneg %p145
        %p274 = pneg %p142
        %p275 = pneg %p166
        %p276 = pneg %p163
        %p277 = pneg %p192
        %p278 = pneg %p189
        %p279 = scmp.lt.s32.totalorder %s19, 1
        %s280 = scalar_select %p279, %s19, 1
        %s281 = smul.addr %s280, 8
        %s282 = scalar_lea.vmem %s7, %s281
        %p283 = scmp.lt.s32.totalorder %s19, 1
        %s284 = scalar_select %p283, %s19, 1
        %s285 = smul.addr %s284, 4
        %s286 = smul.addr %s285, 4
        %s287 = scalar_lea.vmem %s0, %s286
        %p288 = scmp.lt.s32.totalorder %s19, 1
        %s289 = scalar_select %p288, %s19, 1
        %s290 = smul.addr %s289, 8
        %s291 = scalar_lea.vmem %s7, %s290
        %s293 = smul.u32 0, 4
        %s294 = smul.addr %s293, 4
        %s295 = scalar_lea.vmem %s287, %s294
        %v296 = vld [vmem:[%s295] sm:$0xff]
        %v297 = vld [vmem:[%s295 + $0x8] sm:$0xff]
        %v298 = vld [vmem:[#allocation2] sm:$0xff]
        %v299 = vld [vmem:[#allocation2 + $0x8] sm:$0xf]
        %v300 = vld [vmem:[#allocation2 + $0xc] sm:$0xff]
        %v301 = vld [vmem:[#allocation2 + $0x14] sm:$0xf]
        %v302 = vld [vmem:[#allocation2 + $0x18] sm:$0xff]
        %v303 = vld [vmem:[#allocation2 + $0x20] sm:$0xf]
        %v304 = vld [vmem:[#allocation2 + $0x24] sm:$0xff]
        %v305 = vld [vmem:[#allocation2 + $0x2c] sm:$0xf]
        %v306 = vld [vmem:[#allocation2 + $0x30] sm:$0xff]
        %v307 = vld [vmem:[#allocation2 + $0x38] sm:$0xf]
        %v308 = vld [vmem:[#allocation2 + $0x3c] sm:$0xff]
        %v309 = vld [vmem:[#allocation2 + $0x44] sm:$0xf]
        %v310 = vld [vmem:[#allocation2 + $0x48] sm:$0xff]
        %v311 = vld [vmem:[#allocation2 + $0x50] sm:$0xf]
        %v312 = vld [vmem:[#allocation2 + $0x54] sm:$0xff]
        %v313 = vld [vmem:[#allocation2 + $0x5c] sm:$0xf]
        %v314 = vld [vmem:[#allocation2 + $0x60] sm:$0xff]
        %v315 = vld [vmem:[#allocation2 + $0x68] sm:$0xf]
        %v316 = vld [vmem:[#allocation2 + $0x6c] sm:$0xff]
        %v317 = vld [vmem:[#allocation2 + $0x74] sm:$0xf]
        %v318 = vld [vmem:[#allocation2 + $0x78] sm:$0xff]
        %v319 = vld [vmem:[#allocation2 + $0x80] sm:$0xf]
        %v320 = vld [vmem:[#allocation2 + $0x84] sm:$0xff]
        %v321 = vld [vmem:[#allocation2 + $0x8c] sm:$0xf]
        %v322 = vld [vmem:[#allocation2 + $0x90] sm:$0xff]
        %v323 = vld [vmem:[#allocation2 + $0x98] sm:$0xf]
        %v324 = vld [vmem:[#allocation2 + $0x9c] sm:$0xff]
        %v325 = vld [vmem:[#allocation2 + $0xa4] sm:$0xf]
        %v326 = vld [vmem:[#allocation2 + $0xa8] sm:$0xff]
        %v327 = vld [vmem:[#allocation2 + $0xb0] sm:$0xf]
        %v328 = vld [vmem:[#allocation2 + $0xb4] sm:$0xff]
        %v329 = vld [vmem:[#allocation2 + $0xbc] sm:$0xf]
        %v330 = vld [vmem:[#allocation2 + $0xc0] sm:$0xff]
        %v331 = vld [vmem:[#allocation2 + $0xc8] sm:$0xf]
        %v332 = vld [vmem:[#allocation2 + $0xcc] sm:$0xff]
        %v333 = vld [vmem:[#allocation2 + $0xd4] sm:$0xf]
        %v334 = vld [vmem:[#allocation2 + $0xd8] sm:$0xff]
        %v335 = vld [vmem:[#allocation2 + $0xe0] sm:$0xf]
        %v336 = vld [vmem:[#allocation2 + $0xe4] sm:$0xff]
        %v337 = vld [vmem:[#allocation2 + $0xec] sm:$0xf]
        %v338 = vld [vmem:[#allocation2 + $0xf0] sm:$0xff]
        %v339 = vld [vmem:[#allocation2 + $0xf8] sm:$0xf]
        %v340 = vld [vmem:[#allocation2 + $0xfc] sm:$0xff]
        %v341 = vld [vmem:[#allocation2 + $0x104] sm:$0xf]
        %v342 = vld [vmem:[#allocation2 + $0x108] sm:$0xff]
        %v343 = vld [vmem:[#allocation2 + $0x110] sm:$0xf]
        %v344 = vld [vmem:[#allocation2 + $0x114] sm:$0xff]
        %v345 = vld [vmem:[#allocation2 + $0x11c] sm:$0xf]
        %v346 = vld [vmem:[#allocation2 + $0x120] sm:$0xff]
        %v347 = vld [vmem:[#allocation2 + $0x128] sm:$0xf]
        %v348 = vld [vmem:[#allocation2 + $0x12c] sm:$0xff]
        %v349 = vld [vmem:[#allocation2 + $0x134] sm:$0xf]
        %v350 = vld [vmem:[#allocation2 + $0x138] sm:$0xff]
        %v351 = vld [vmem:[#allocation2 + $0x140] sm:$0xf]
        %v352 = vld [vmem:[#allocation2 + $0x144] sm:$0xff]
        %v353 = vld [vmem:[#allocation2 + $0x14c] sm:$0xf]
        %v354 = vld [vmem:[#allocation2 + $0x150] sm:$0xff]
        %v355 = vld [vmem:[#allocation2 + $0x158] sm:$0xf]
        %v356 = vld [vmem:[#allocation2 + $0x15c] sm:$0xff]
        %v357 = vld [vmem:[#allocation2 + $0x164] sm:$0xf]
        %v358 = vld [vmem:[#allocation2 + $0x168] sm:$0xff]
        %v359 = vld [vmem:[#allocation2 + $0x170] sm:$0xf]
        %v360 = vld [vmem:[#allocation2 + $0x174] sm:$0xff]
        %v361 = vld [vmem:[#allocation2 + $0x17c] sm:$0xf]
        %v362 = vld [vmem:[#allocation2 + $0x180] sm:$0xff]
        %v363 = vld [vmem:[#allocation2 + $0x188] sm:$0xf]
        %v364 = vld [vmem:[#allocation2 + $0x18c] sm:$0xff]
        %v365 = vld [vmem:[#allocation2 + $0x194] sm:$0xf]
        %v366 = vld [vmem:[#allocation2 + $0x198] sm:$0xff]
        %v367 = vld [vmem:[#allocation2 + $0x1a0] sm:$0xf]
        %v368 = vld [vmem:[#allocation2 + $0x1a4] sm:$0xff]
        %v369 = vld [vmem:[#allocation2 + $0x1ac] sm:$0xf]
        %v370 = vld [vmem:[#allocation2 + $0x1b0] sm:$0xff]
        %v371 = vld [vmem:[#allocation2 + $0x1b8] sm:$0xf]
        %v372 = vld [vmem:[#allocation2 + $0x1bc] sm:$0xff]
        %v373 = vld [vmem:[#allocation2 + $0x1c4] sm:$0xf]
        %v374 = vld [vmem:[#allocation2 + $0x1c8] sm:$0xff]
        %v375 = vld [vmem:[#allocation2 + $0x1d0] sm:$0xf]
        %v376 = vld [vmem:[#allocation2 + $0x1d4] sm:$0xff]
        %v377 = vld [vmem:[#allocation2 + $0x1dc] sm:$0xf]
        %v378 = vld [vmem:[#allocation2 + $0x1e0] sm:$0xff]
        %v379 = vld [vmem:[#allocation2 + $0x1e8] sm:$0xf]
        %v380 = vld [vmem:[#allocation2 + $0x1ec] sm:$0xff]
        %v381 = vld [vmem:[#allocation2 + $0x1f4] sm:$0xf]
        %v382 = vld [vmem:[#allocation2 + $0x1f8] sm:$0xff]
        %v383 = vld [vmem:[#allocation2 + $0x200] sm:$0xf]
        %v384 = vld [vmem:[#allocation2 + $0x204] sm:$0xff]
        %v385 = vld [vmem:[#allocation2 + $0x20c] sm:$0xf]
        %v386 = vld [vmem:[#allocation2 + $0x210] sm:$0xff]
        %v387 = vld [vmem:[#allocation2 + $0x218] sm:$0xf]
        %v388 = vld [vmem:[#allocation2 + $0x21c] sm:$0xff]
        %v389 = vld [vmem:[#allocation2 + $0x224] sm:$0xf]
        %v390 = vld [vmem:[#allocation2 + $0x228] sm:$0xff]
        %v391 = vld [vmem:[#allocation2 + $0x230] sm:$0xf]
        %v392 = vld [vmem:[#allocation2 + $0x234] sm:$0xff]
        %v393 = vld [vmem:[#allocation2 + $0x23c] sm:$0xf]
        %v394 = vld [vmem:[#allocation2 + $0x240] sm:$0xff]
        %v395 = vld [vmem:[#allocation2 + $0x248] sm:$0xf]
        %v396 = vld [vmem:[#allocation2 + $0x24c] sm:$0xff]
        %v397 = vld [vmem:[#allocation2 + $0x254] sm:$0xf]
        %v398 = vld [vmem:[#allocation2 + $0x258] sm:$0xff]
        %v399 = vld [vmem:[#allocation2 + $0x260] sm:$0xf]
        %v400 = vld [vmem:[#allocation2 + $0x264] sm:$0xff]
        %v401 = vld [vmem:[#allocation2 + $0x26c] sm:$0xf]
        %v402 = vld [vmem:[#allocation2 + $0x270] sm:$0xff]
        %v403 = vld [vmem:[#allocation2 + $0x278] sm:$0xf]
        %v404 = vld [vmem:[#allocation2 + $0x27c] sm:$0xff]
        %v405 = vld [vmem:[#allocation2 + $0x284] sm:$0xf]
        %v406 = vld [vmem:[#allocation2 + $0x288] sm:$0xff]
        %v407 = vld [vmem:[#allocation2 + $0x290] sm:$0xf]
        %v408 = vld [vmem:[#allocation2 + $0x294] sm:$0xff]
        %v409 = vld [vmem:[#allocation2 + $0x29c] sm:$0xf]
        %v410 = vld [vmem:[#allocation2 + $0x2a0] sm:$0xff]
        %v411 = vld [vmem:[#allocation2 + $0x2a8] sm:$0xf]
        %v412 = vld [vmem:[#allocation2 + $0x2ac] sm:$0xff]
        %v413 = vld [vmem:[#allocation2 + $0x2b4] sm:$0xf]
        %v414 = vld [vmem:[#allocation2 + $0x2b8] sm:$0xff]
        %v415 = vld [vmem:[#allocation2 + $0x2c0] sm:$0xf]
        %v416 = vld [vmem:[#allocation2 + $0x2c4] sm:$0xff]
        %v417 = vld [vmem:[#allocation2 + $0x2cc] sm:$0xf]
        %v418 = vld [vmem:[#allocation2 + $0x2d0] sm:$0xff]
        %v419 = vld [vmem:[#allocation2 + $0x2d8] sm:$0xf]
        %v420 = vld [vmem:[#allocation2 + $0x2dc] sm:$0xff]
        %v421 = vld [vmem:[#allocation2 + $0x2e4] sm:$0xf]
        %v422 = vld [vmem:[#allocation2 + $0x2e8] sm:$0xff]
        %v423 = vld [vmem:[#allocation2 + $0x2f0] sm:$0xf]
        %v424 = vld [vmem:[#allocation2 + $0x2f4] sm:$0xff]
        %v425 = vld [vmem:[#allocation2 + $0x2fc] sm:$0xf]
        %v428 = vunpack.c.l.b16 %v296
        %v429 = vunpack.c.h.b16 %v296
        %v430 = vunpack.c.l.b16 %v297
        %v431 = vunpack.c.h.b16 %v297
        %v432 = vpack.c.b16 %v428, %v428
        %v433 = vpack.c.b16 %v429, %v429
        %v434 = vpack.c.b16 %v430, %v430
        %v435 = vpack.c.b16 %v431, %v431
        %v568 = vunpack.c.l.b16 %v298
        %v569 = vunpack.c.h.b16 %v298
        %v570 = vunpack.c.l.b16 %v299
        %v571 = vunpack.c.l.b16 %v300
        %v572 = vunpack.c.h.b16 %v300
        %v573 = vunpack.c.l.b16 %v301
        %v574 = vunpack.c.l.b16 %v302
        %v575 = vunpack.c.h.b16 %v302
        %v576 = vunpack.c.l.b16 %v303
        %v577 = vunpack.c.l.b16 %v304
        %v578 = vunpack.c.h.b16 %v304
        %v579 = vunpack.c.l.b16 %v305
        %v580 = vunpack.c.l.b16 %v306
        %v581 = vunpack.c.h.b16 %v306
        %v582 = vunpack.c.l.b16 %v307
        %v583 = vunpack.c.l.b16 %v308
        %v584 = vunpack.c.h.b16 %v308
        %v585 = vunpack.c.l.b16 %v309
        %v586 = vunpack.c.l.b16 %v310
        %v587 = vunpack.c.h.b16 %v310
        %v588 = vunpack.c.l.b16 %v311
        %v589 = vunpack.c.l.b16 %v312
        %v590 = vunpack.c.h.b16 %v312
        %v591 = vunpack.c.l.b16 %v313
        %v592 = vunpack.c.l.b16 %v314
        %v593 = vunpack.c.h.b16 %v314
        %v594 = vunpack.c.l.b16 %v315
        %v595 = vunpack.c.l.b16 %v316
        %v596 = vunpack.c.h.b16 %v316
        %v597 = vunpack.c.l.b16 %v317
        %v598 = vunpack.c.l.b16 %v318
        %v599 = vunpack.c.h.b16 %v318
        %v600 = vunpack.c.l.b16 %v319
        %v601 = vunpack.c.l.b16 %v320
        %v602 = vunpack.c.h.b16 %v320
        %v603 = vunpack.c.l.b16 %v321
        %v604 = vunpack.c.l.b16 %v322
        %v605 = vunpack.c.h.b16 %v322
        %v606 = vunpack.c.l.b16 %v323
        %v607 = vunpack.c.l.b16 %v324
        %v608 = vunpack.c.h.b16 %v324
        %v609 = vunpack.c.l.b16 %v325
        %v610 = vunpack.c.l.b16 %v326
        %v611 = vunpack.c.h.b16 %v326
        %v612 = vunpack.c.l.b16 %v327
        %v613 = vunpack.c.l.b16 %v328
        %v614 = vunpack.c.h.b16 %v328
        %v615 = vunpack.c.l.b16 %v329
        %v616 = vunpack.c.l.b16 %v330
        %v617 = vunpack.c.h.b16 %v330
        %v618 = vunpack.c.l.b16 %v331
        %v619 = vunpack.c.l.b16 %v332
        %v620 = vunpack.c.h.b16 %v332
        %v621 = vunpack.c.l.b16 %v333
        %v622 = vunpack.c.l.b16 %v334
        %v623 = vunpack.c.h.b16 %v334
        %v624 = vunpack.c.l.b16 %v335
        %v625 = vunpack.c.l.b16 %v336
        %v626 = vunpack.c.h.b16 %v336
        %v627 = vunpack.c.l.b16 %v337
        %v628 = vunpack.c.l.b16 %v338
        %v629 = vunpack.c.h.b16 %v338
        %v630 = vunpack.c.l.b16 %v339
        %v631 = vunpack.c.l.b16 %v340
        %v632 = vunpack.c.h.b16 %v340
        %v633 = vunpack.c.l.b16 %v341
        %v634 = vunpack.c.l.b16 %v342
        %v635 = vunpack.c.h.b16 %v342
        %v636 = vunpack.c.l.b16 %v343
        %v637 = vunpack.c.l.b16 %v344
        %v638 = vunpack.c.h.b16 %v344
        %v639 = vunpack.c.l.b16 %v345
        %v640 = vunpack.c.l.b16 %v346
        %v641 = vunpack.c.h.b16 %v346
        %v642 = vunpack.c.l.b16 %v347
        %v643 = vunpack.c.l.b16 %v348
        %v644 = vunpack.c.h.b16 %v348
        %v645 = vunpack.c.l.b16 %v349
        %v646 = vunpack.c.l.b16 %v350
        %v647 = vunpack.c.h.b16 %v350
        %v648 = vunpack.c.l.b16 %v351
        %v649 = vunpack.c.l.b16 %v352
        %v650 = vunpack.c.h.b16 %v352
        %v651 = vunpack.c.l.b16 %v353
        %v652 = vunpack.c.l.b16 %v354
        %v653 = vunpack.c.h.b16 %v354
        %v654 = vunpack.c.l.b16 %v355
        %v655 = vunpack.c.l.b16 %v356
        %v656 = vunpack.c.h.b16 %v356
        %v657 = vunpack.c.l.b16 %v357
        %v658 = vunpack.c.l.b16 %v358
        %v659 = vunpack.c.h.b16 %v358
        %v660 = vunpack.c.l.b16 %v359
        %v661 = vunpack.c.l.b16 %v360
        %v662 = vunpack.c.h.b16 %v360
        %v663 = vunpack.c.l.b16 %v361
        %v664 = vunpack.c.l.b16 %v362
        %v665 = vunpack.c.h.b16 %v362
        %v666 = vunpack.c.l.b16 %v363
        %v667 = vunpack.c.l.b16 %v364
        %v668 = vunpack.c.h.b16 %v364
        %v669 = vunpack.c.l.b16 %v365
        %v670 = vunpack.c.l.b16 %v366
        %v671 = vunpack.c.h.b16 %v366
        %v672 = vunpack.c.l.b16 %v367
        %v673 = vunpack.c.l.b16 %v368
        %v674 = vunpack.c.h.b16 %v368
        %v675 = vunpack.c.l.b16 %v369
        %v676 = vunpack.c.l.b16 %v370
        %v677 = vunpack.c.h.b16 %v370
        %v678 = vunpack.c.l.b16 %v371
        %v679 = vunpack.c.l.b16 %v372
        %v680 = vunpack.c.h.b16 %v372
        %v681 = vunpack.c.l.b16 %v373
        %v682 = vunpack.c.l.b16 %v374
        %v683 = vunpack.c.h.b16 %v374
        %v684 = vunpack.c.l.b16 %v375
        %v685 = vunpack.c.l.b16 %v376
        %v686 = vunpack.c.h.b16 %v376
        %v687 = vunpack.c.l.b16 %v377
        %v688 = vunpack.c.l.b16 %v378
        %v689 = vunpack.c.h.b16 %v378
        %v690 = vunpack.c.l.b16 %v379
        %v691 = vunpack.c.l.b16 %v380
        %v692 = vunpack.c.h.b16 %v380
        %v693 = vunpack.c.l.b16 %v381
        %v694 = vunpack.c.l.b16 %v382
        %v695 = vunpack.c.h.b16 %v382
        %v696 = vunpack.c.l.b16 %v383
        %v697 = vunpack.c.l.b16 %v384
        %v698 = vunpack.c.h.b16 %v384
        %v699 = vunpack.c.l.b16 %v385
        %v700 = vunpack.c.l.b16 %v386
        %v701 = vunpack.c.h.b16 %v386
        %v702 = vunpack.c.l.b16 %v387
        %v703 = vunpack.c.l.b16 %v388
        %v704 = vunpack.c.h.b16 %v388
        %v705 = vunpack.c.l.b16 %v389
        %v706 = vunpack.c.l.b16 %v390
        %v707 = vunpack.c.h.b16 %v390
        %v708 = vunpack.c.l.b16 %v391
        %v709 = vunpack.c.l.b16 %v392
        %v710 = vunpack.c.h.b16 %v392
        %v711 = vunpack.c.l.b16 %v393
        %v712 = vunpack.c.l.b16 %v394
        %v713 = vunpack.c.h.b16 %v394
        %v714 = vunpack.c.l.b16 %v395
        %v715 = vunpack.c.l.b16 %v396
        %v716 = vunpack.c.h.b16 %v396
        %v717 = vunpack.c.l.b16 %v397
        %v718 = vunpack.c.l.b16 %v398
        %v719 = vunpack.c.h.b16 %v398
        %v720 = vunpack.c.l.b16 %v399
        %v721 = vunpack.c.l.b16 %v400
        %v722 = vunpack.c.h.b16 %v400
        %v723 = vunpack.c.l.b16 %v401
        %v724 = vunpack.c.l.b16 %v402
        %v725 = vunpack.c.h.b16 %v402
        %v726 = vunpack.c.l.b16 %v403
        %v727 = vunpack.c.l.b16 %v404
        %v728 = vunpack.c.h.b16 %v404
        %v729 = vunpack.c.l.b16 %v405
        %v730 = vunpack.c.l.b16 %v406
        %v731 = vunpack.c.h.b16 %v406
        %v732 = vunpack.c.l.b16 %v407
        %v733 = vunpack.c.l.b16 %v408
        %v734 = vunpack.c.h.b16 %v408
        %v735 = vunpack.c.l.b16 %v409
        %v736 = vunpack.c.l.b16 %v410
        %v737 = vunpack.c.h.b16 %v410
        %v738 = vunpack.c.l.b16 %v411
        %v739 = vunpack.c.l.b16 %v412
        %v740 = vunpack.c.h.b16 %v412
        %v741 = vunpack.c.l.b16 %v413
        %v742 = vunpack.c.l.b16 %v414
        %v743 = vunpack.c.h.b16 %v414
        %v744 = vunpack.c.l.b16 %v415
        %v745 = vunpack.c.l.b16 %v416
        %v746 = vunpack.c.h.b16 %v416
        %v747 = vunpack.c.l.b16 %v417
        %v748 = vunpack.c.l.b16 %v418
        %v749 = vunpack.c.h.b16 %v418
        %v750 = vunpack.c.l.b16 %v419
        %v751 = vunpack.c.l.b16 %v420
        %v752 = vunpack.c.h.b16 %v420
        %v753 = vunpack.c.l.b16 %v421
        %v754 = vunpack.c.l.b16 %v422
        %v755 = vunpack.c.h.b16 %v422
        %v756 = vunpack.c.l.b16 %v423
        %v757 = vunpack.c.l.b16 %v424
        %v758 = vunpack.c.h.b16 %v424
        %v759 = vunpack.c.l.b16 %v425
        %v760 = vpack.c.b16 %v571, %v568
        %v761 = vpack.c.b16 %v572, %v569
        %v762 = vpack.c.b16 %v573, %v570
        %v763 = vpack.c.b16 %v577, %v574
        %v764 = vpack.c.b16 %v578, %v575
        %v765 = vpack.c.b16 %v579, %v576
        %v766 = vpack.c.b16 %v583, %v580
        %v767 = vpack.c.b16 %v584, %v581
        %v768 = vpack.c.b16 %v585, %v582
        %v769 = vpack.c.b16 %v589, %v586
        %v770 = vpack.c.b16 %v590, %v587
        %v771 = vpack.c.b16 %v591, %v588
        %v772 = vpack.c.b16 %v595, %v592
        %v773 = vpack.c.b16 %v596, %v593
        %v774 = vpack.c.b16 %v597, %v594
        %v775 = vpack.c.b16 %v601, %v598
        %v776 = vpack.c.b16 %v602, %v599
        %v777 = vpack.c.b16 %v603, %v600
        %v778 = vpack.c.b16 %v607, %v604
        %v779 = vpack.c.b16 %v608, %v605
        %v780 = vpack.c.b16 %v609, %v606
        %v781 = vpack.c.b16 %v613, %v610
        %v782 = vpack.c.b16 %v614, %v611
        %v783 = vpack.c.b16 %v615, %v612
        %v784 = vpack.c.b16 %v619, %v616
        %v785 = vpack.c.b16 %v620, %v617
        %v786 = vpack.c.b16 %v621, %v618
        %v787 = vpack.c.b16 %v625, %v622
        %v788 = vpack.c.b16 %v626, %v623
        %v789 = vpack.c.b16 %v627, %v624
        %v790 = vpack.c.b16 %v631, %v628
        %v791 = vpack.c.b16 %v632, %v629
        %v792 = vpack.c.b16 %v633, %v630
        %v793 = vpack.c.b16 %v637, %v634
        %v794 = vpack.c.b16 %v638, %v635
        %v795 = vpack.c.b16 %v639, %v636
        %v796 = vpack.c.b16 %v643, %v640
        %v797 = vpack.c.b16 %v644, %v641
        %v798 = vpack.c.b16 %v645, %v642
        %v799 = vpack.c.b16 %v649, %v646
        %v800 = vpack.c.b16 %v650, %v647
        %v801 = vpack.c.b16 %v651, %v648
        %v802 = vpack.c.b16 %v655, %v652
        %v803 = vpack.c.b16 %v656, %v653
        %v804 = vpack.c.b16 %v657, %v654
        %v805 = vpack.c.b16 %v661, %v658
        %v806 = vpack.c.b16 %v662, %v659
        %v807 = vpack.c.b16 %v663, %v660
        %v808 = vpack.c.b16 %v667, %v664
        %v809 = vpack.c.b16 %v668, %v665
        %v810 = vpack.c.b16 %v669, %v666
        %v811 = vpack.c.b16 %v673, %v670
        %v812 = vpack.c.b16 %v674, %v671
        %v813 = vpack.c.b16 %v675, %v672
        %v814 = vpack.c.b16 %v679, %v676
        %v815 = vpack.c.b16 %v680, %v677
        %v816 = vpack.c.b16 %v681, %v678
        %v817 = vpack.c.b16 %v685, %v682
        %v818 = vpack.c.b16 %v686, %v683
        %v819 = vpack.c.b16 %v687, %v684
        %v820 = vpack.c.b16 %v691, %v688
        %v821 = vpack.c.b16 %v692, %v689
        %v822 = vpack.c.b16 %v693, %v690
        %v823 = vpack.c.b16 %v697, %v694
        %v824 = vpack.c.b16 %v698, %v695
        %v825 = vpack.c.b16 %v699, %v696
        %v826 = vpack.c.b16 %v703, %v700
        %v827 = vpack.c.b16 %v704, %v701
        %v828 = vpack.c.b16 %v705, %v702
        %v829 = vpack.c.b16 %v709, %v706
        %v830 = vpack.c.b16 %v710, %v707
        %v831 = vpack.c.b16 %v711, %v708
        %v832 = vpack.c.b16 %v715, %v712
        %v833 = vpack.c.b16 %v716, %v713
        %v834 = vpack.c.b16 %v717, %v714
        %v835 = vpack.c.b16 %v721, %v718
        %v836 = vpack.c.b16 %v722, %v719
        %v837 = vpack.c.b16 %v723, %v720
        %v838 = vpack.c.b16 %v727, %v724
        %v839 = vpack.c.b16 %v728, %v725
        %v840 = vpack.c.b16 %v729, %v726
        %v841 = vpack.c.b16 %v733, %v730
        %v842 = vpack.c.b16 %v734, %v731
        %v843 = vpack.c.b16 %v735, %v732
        %v844 = vpack.c.b16 %v739, %v736
        %v845 = vpack.c.b16 %v740, %v737
        %v846 = vpack.c.b16 %v741, %v738
        %v847 = vpack.c.b16 %v745, %v742
        %v848 = vpack.c.b16 %v746, %v743
        %v849 = vpack.c.b16 %v747, %v744
        %v850 = vpack.c.b16 %v751, %v748
        %v851 = vpack.c.b16 %v752, %v749
        %v852 = vpack.c.b16 %v753, %v750
        %v853 = vpack.c.b16 %v757, %v754
        %v854 = vpack.c.b16 %v758, %v755
        %v855 = vpack.c.b16 %v759, %v756
        %952 = vmatprep.subr.bf16.mxu0 %v761
        %953 = vmatpush1.bf16.msra.mxu0 %v760
        %954 = vmatprep.subr.bf16.mxu0 %v764
        %955 = vmatpush1.bf16.msra.mxu0 %v763
        %956 = vmatprep.subr.bf16.mxu0 %v767
        %957 = vmatpush1.bf16.msra.mxu0 %v766
        %958 = vmatprep.subr.bf16.mxu0 %v770
        %959 = vmatpush1.bf16.msra.mxu0 %v769
        %960 = vmatprep.subr.bf16.mxu0 %v773
        %961 = vmatpush1.bf16.msra.mxu0 %v772
        %962 = vmatprep.subr.bf16.mxu0 %v776
        %963 = vmatpush1.bf16.msra.mxu0 %v775
        %964 = vmatprep.subr.bf16.mxu0 %v779
        %965 = vmatpush1.bf16.msra.mxu0 %v778
        %966 = vmatprep.subr.bf16.mxu0 %v782
        %967 = vmatpush1.bf16.msra.mxu0 %v781
        %968 = vmatprep.subr.bf16.mxu0 %v785
        %969 = vmatpush1.bf16.msra.mxu0 %v784
        %970 = vmatprep.subr.bf16.mxu0 %v788
        %971 = vmatpush1.bf16.msra.mxu0 %v787
        %972 = vmatprep.subr.bf16.mxu0 %v791
        %973 = vmatpush1.bf16.msra.mxu0 %v790
        %974 = vmatprep.subr.bf16.mxu0 %v794
        %975 = vmatpush1.bf16.msra.mxu0 %v793
        %976 = vmatprep.subr.bf16.mxu0 %v797
        %977 = vmatpush1.bf16.msra.mxu0 %v796
        %978 = vmatprep.subr.bf16.mxu0 %v800
        %979 = vmatpush1.bf16.msra.mxu0 %v799
        %980 = vmatprep.subr.bf16.mxu0 %v803
        %981 = vmatpush1.bf16.msra.mxu0 %v802
        %982 = vmatprep.subr.bf16.mxu0 %v806
        %983 = vmatpush1.bf16.msra.mxu0 %v805
        %984 = vmatprep.mubr.bf16.mxu0 %v433
        %985 = vmatmul.mubr.bf16.gmra.mrb[0].mxu0 %v432
        %v986 = vpop.f32.mrb[0].mxu0
        %v987 = vadd.f32 0.0, %v986
        %v988 = vpop.f32.mrb[0].mxu0
        %v989 = vadd.f32 0.0, %v988
        %v990 = vpop.f32.mrb[0].mxu0
        %v991 = vpop.f32.mrb[0].mxu0
        %992 = vdwg.mxu0
        %993 = vmatprep.subr.bf16.mxu0 %v809
        %994 = vmatpush1.bf16.msra.mxu0 %v808
        %995 = vmatprep.subr.bf16.mxu0 %v812
        %996 = vmatpush1.bf16.msra.mxu0 %v811
        %997 = vmatprep.subr.bf16.mxu0 %v815
        %998 = vmatpush1.bf16.msra.mxu0 %v814
        %999 = vmatprep.subr.bf16.mxu0 %v818
        %1000 = vmatpush1.bf16.msra.mxu0 %v817
        %1001 = vmatprep.subr.bf16.mxu0 %v821
        %1002 = vmatpush1.bf16.msra.mxu0 %v820
        %1003 = vmatprep.subr.bf16.mxu0 %v824
        %1004 = vmatpush1.bf16.msra.mxu0 %v823
        %1005 = vmatprep.subr.bf16.mxu0 %v827
        %1006 = vmatpush1.bf16.msra.mxu0 %v826
        %1007 = vmatprep.subr.bf16.mxu0 %v830
        %1008 = vmatpush1.bf16.msra.mxu0 %v829
        %1009 = vmatprep.subr.bf16.mxu0 %v833
        %1010 = vmatpush1.bf16.msra.mxu0 %v832
        %1011 = vmatprep.subr.bf16.mxu0 %v836
        %1012 = vmatpush1.bf16.msra.mxu0 %v835
        %1013 = vmatprep.subr.bf16.mxu0 %v839
        %1014 = vmatpush1.bf16.msra.mxu0 %v838
        %1015 = vmatprep.subr.bf16.mxu0 %v842
        %1016 = vmatpush1.bf16.msra.mxu0 %v841
        %1017 = vmatprep.subr.bf16.mxu0 %v845
        %1018 = vmatpush1.bf16.msra.mxu0 %v844
        %1019 = vmatprep.subr.bf16.mxu0 %v848
        %1020 = vmatpush1.bf16.msra.mxu0 %v847
        %1021 = vmatprep.subr.bf16.mxu0 %v851
        %1022 = vmatpush1.bf16.msra.mxu0 %v850
        %1023 = vmatprep.subr.bf16.mxu0 %v854
        %1024 = vmatpush1.bf16.msra.mxu0 %v853
        %1025 = vmatprep.mubr.bf16.mxu0 %v435
        %1026 = vmatmul.mubr.bf16.gmra.mrb[0].mxu0 %v434
        %v1027 = vpop.f32.mrb[0].mxu0
        %v1028 = vadd.f32 %v987, %v1027
        %v1029 = vpop.f32.mrb[0].mxu0
        %v1030 = vadd.f32 %v989, %v1029
        %v1031 = vpop.f32.mrb[0].mxu0
        %v1032 = vpop.f32.mrb[0].mxu0
        %1033 = vdwg.mxu0
        %1034 = vmatprep.subr.bf16.mxu0 0
        %1035 = vmatpush1.bf16.msra.mxu0 %v762
        %1036 = vmatprep.subr.bf16.mxu0 0
        %1037 = vmatpush1.bf16.msra.mxu0 %v765
        %1038 = vmatprep.subr.bf16.mxu0 0
        %1039 = vmatpush1.bf16.msra.mxu0 %v768
        %1040 = vmatprep.subr.bf16.mxu0 0
        %1041 = vmatpush1.bf16.msra.mxu0 %v771
        %1042 = vmatprep.subr.bf16.mxu0 0
        %1043 = vmatpush1.bf16.msra.mxu0 %v774
        %1044 = vmatprep.subr.bf16.mxu0 0
        %1045 = vmatpush1.bf16.msra.mxu0 %v777
        %1046 = vmatprep.subr.bf16.mxu0 0
        %1047 = vmatpush1.bf16.msra.mxu0 %v780
        %1048 = vmatprep.subr.bf16.mxu0 0
        %1049 = vmatpush1.bf16.msra.mxu0 %v783
        %1050 = vmatprep.subr.bf16.mxu0 0
        %1051 = vmatpush1.bf16.msra.mxu0 %v786
        %1052 = vmatprep.subr.bf16.mxu0 0
        %1053 = vmatpush1.bf16.msra.mxu0 %v789
        %1054 = vmatprep.subr.bf16.mxu0 0
        %1055 = vmatpush1.bf16.msra.mxu0 %v792
        %1056 = vmatprep.subr.bf16.mxu0 0
        %1057 = vmatpush1.bf16.msra.mxu0 %v795
        %1058 = vmatprep.subr.bf16.mxu0 0
        %1059 = vmatpush1.bf16.msra.mxu0 %v798
        %1060 = vmatprep.subr.bf16.mxu0 0
        %1061 = vmatpush1.bf16.msra.mxu0 %v801
        %1062 = vmatprep.subr.bf16.mxu0 0
        %1063 = vmatpush1.bf16.msra.mxu0 %v804
        %1064 = vmatprep.subr.bf16.mxu0 0
        %1065 = vmatpush1.bf16.msra.mxu0 %v807
        %1066 = vmatprep.mubr.bf16.mxu0 %v433
        %1067 = vmatmul.mubr.bf16.gmra.mrb[0].mxu0 %v432
        %v1068 = vpop.f32.mrb[0].mxu0
        %v1069 = vadd.f32 0.0, %v1068
        %v1070 = vpop.f32.mrb[0].mxu0
        %v1071 = vpop.f32.mrb[0].mxu0
        %v1072 = vpop.f32.mrb[0].mxu0
        %1073 = vdwg.mxu0
        %1074 = vmatprep.subr.bf16.mxu0 0
        %1075 = vmatpush1.bf16.msra.mxu0 %v810
        %1076 = vmatprep.subr.bf16.mxu0 0
        %1077 = vmatpush1.bf16.msra.mxu0 %v813
        %1078 = vmatprep.subr.bf16.mxu0 0
        %1079 = vmatpush1.bf16.msra.mxu0 %v816
        %1080 = vmatprep.subr.bf16.mxu0 0
        %1081 = vmatpush1.bf16.msra.mxu0 %v819
        %1082 = vmatprep.subr.bf16.mxu0 0
        %1083 = vmatpush1.bf16.msra.mxu0 %v822
        %1084 = vmatprep.subr.bf16.mxu0 0
        %1085 = vmatpush1.bf16.msra.mxu0 %v825
        %1086 = vmatprep.subr.bf16.mxu0 0
        %1087 = vmatpush1.bf16.msra.mxu0 %v828
        %1088 = vmatprep.subr.bf16.mxu0 0
        %1089 = vmatpush1.bf16.msra.mxu0 %v831
        %1090 = vmatprep.subr.bf16.mxu0 0
        %1091 = vmatpush1.bf16.msra.mxu0 %v834
        %1092 = vmatprep.subr.bf16.mxu0 0
        %1093 = vmatpush1.bf16.msra.mxu0 %v837
        %1094 = vmatprep.subr.bf16.mxu0 0
        %1095 = vmatpush1.bf16.msra.mxu0 %v840
        %1096 = vmatprep.subr.bf16.mxu0 0
        %1097 = vmatpush1.bf16.msra.mxu0 %v843
        %1098 = vmatprep.subr.bf16.mxu0 0
        %1099 = vmatpush1.bf16.msra.mxu0 %v846
        %1100 = vmatprep.subr.bf16.mxu0 0
        %1101 = vmatpush1.bf16.msra.mxu0 %v849
        %1102 = vmatprep.subr.bf16.mxu0 0
        %1103 = vmatpush1.bf16.msra.mxu0 %v852
        %1104 = vmatprep.subr.bf16.mxu0 0
        %1105 = vmatpush1.bf16.msra.mxu0 %v855
        %1106 = vmatprep.mubr.bf16.mxu0 %v435
        %1107 = vmatmul.mubr.bf16.gmra.mrb[0].mxu0 %v434
        %v1108 = vpop.f32.mrb[0].mxu0
        %v1109 = vadd.f32 %v1069, %v1108
        %v1110 = vpop.f32.mrb[0].mxu0
        %v1111 = vpop.f32.mrb[0].mxu0
        %v1112 = vpop.f32.mrb[0].mxu0
        %1113 = vdwg.mxu0
        %1114 = vrot.lane.b32.xlu0 %v1028, 64
        %v1115 = vpop.permute.xlu0 %1114
        %v1116 = vmax.f32 %v1028, %v1115
        %1117 = vrot.lane.b32.xlu0 %v1116, 32
        %v1118 = vpop.permute.xlu0 %1117
        %v1119 = vmax.f32 %v1116, %v1118
        %1120 = vrot.lane.b32.xlu0 %v1119, 16
        %v1121 = vpop.permute.xlu0 %1120
        %v1122 = vmax.f32 %v1119, %v1121
        %1123 = vrot.lane.b32.xlu0 %v1122, 8
        %v1124 = vpop.permute.xlu0 %1123
        %v1125 = vmax.f32 %v1122, %v1124
        %v1126 = vld [vmem:[%s2] sm:$0x1]
        %v1128 = vlaneseq
        %v1129 = vshrl.u32 %v1128, 7
        %v1130 = vsub.s32 0, %v1129
        %v1131 = vrot.slane %v1126, %v1130
        %v1133 = vadd.f32 %v1125, %v1131
        %v1134 = vmax.f32 %v1133, 0.0
        %v1135 = vld [vmem:[%s3] sm:$0xff]
        %v1136 = vld [vmem:[%s3 + $0x8] sm:$0xff]
        %v1137 = vld [vmem:[%s3 + $0x10] sm:$0xff]
        %v1138 = vld [vmem:[%s3 + $0x18] sm:$0xff]
        %v1139 = vld [vmem:[%s3 + $0x20] sm:$0xff]
        %v1140 = vld [vmem:[%s3 + $0x28] sm:$0xff]
        %v1141 = vld [vmem:[%s3 + $0x30] sm:$0xff]
        %v1142 = vld [vmem:[%s3 + $0x38] sm:$0xff]
        %v1143 = vld [vmem:[%s3 + $0x40] sm:$0xff]
        %v1144 = vld [vmem:[%s3 + $0x48] sm:$0xff]
        %v1145 = vld [vmem:[%s3 + $0x50] sm:$0xff]
        %v1146 = vld [vmem:[%s3 + $0x58] sm:$0xff]
        %v1147 = vld [vmem:[%s3 + $0x60] sm:$0xff]
        %v1148 = vld [vmem:[%s3 + $0x68] sm:$0xff]
        %v1149 = vld [vmem:[%s3 + $0x70] sm:$0xff]
        %v1150 = vld [vmem:[%s3 + $0x78] sm:$0xff]
        %1151 = vrot.lane.b32.xlu0 %v1030, 64
        %v1152 = vpop.permute.xlu0 %1151
        %v1153 = vmax.f32 %v1030, %v1152
        %1154 = vrot.lane.b32.xlu0 %v1153, 32
        %v1155 = vpop.permute.xlu0 %1154
        %v1156 = vmax.f32 %v1153, %v1155
        %1157 = vrot.lane.b32.xlu0 %v1156, 16
        %v1158 = vpop.permute.xlu0 %1157
        %v1159 = vmax.f32 %v1156, %v1158
        %1160 = vrot.lane.b32.xlu0 %v1159, 8
        %v1161 = vpop.permute.xlu0 %1160
        %v1162 = vmax.f32 %v1159, %v1161
        %v1163 = vld [vmem:[%s2 + $0x1] sm:$0x1]
        %v1165 = vlaneseq
        %v1166 = vshrl.u32 %v1165, 7
        %v1167 = vsub.s32 0, %v1166
        %v1168 = vrot.slane %v1163, %v1167
        %v1170 = vadd.f32 %v1162, %v1168
        %v1171 = vmax.f32 %v1170, 0.0
        %v1172 = vld [vmem:[%s3 + $0x80] sm:$0xff]
        %v1173 = vld [vmem:[%s3 + $0x88] sm:$0xff]
        %v1174 = vld [vmem:[%s3 + $0x90] sm:$0xff]
        %v1175 = vld [vmem:[%s3 + $0x98] sm:$0xff]
        %v1176 = vld [vmem:[%s3 + $0xa0] sm:$0xff]
        %v1177 = vld [vmem:[%s3 + $0xa8] sm:$0xff]
        %v1178 = vld [vmem:[%s3 + $0xb0] sm:$0xff]
        %v1179 = vld [vmem:[%s3 + $0xb8] sm:$0xff]
        %v1180 = vld [vmem:[%s3 + $0xc0] sm:$0xff]
        %v1181 = vld [vmem:[%s3 + $0xc8] sm:$0xff]
        %v1182 = vld [vmem:[%s3 + $0xd0] sm:$0xff]
        %v1183 = vld [vmem:[%s3 + $0xd8] sm:$0xff]
        %v1184 = vld [vmem:[%s3 + $0xe0] sm:$0xff]
        %v1185 = vld [vmem:[%s3 + $0xe8] sm:$0xff]
        %v1186 = vld [vmem:[%s3 + $0xf0] sm:$0xff]
        %v1187 = vld [vmem:[%s3 + $0xf8] sm:$0xff]
        %1188 = vmatprep.subr.mxu0 0.0
        %1189 = vmatpush1.msra.mxu0 %v1172
        %1190 = vmatprep.subr.mxu0 0.0
        %1191 = vmatpush1.msra.mxu0 %v1173
        %1192 = vmatprep.subr.mxu0 0.0
        %1193 = vmatpush1.msra.mxu0 %v1174
        %1194 = vmatprep.subr.mxu0 0.0
        %1195 = vmatpush1.msra.mxu0 %v1175
        %1196 = vmatprep.subr.mxu0 0.0
        %1197 = vmatpush1.msra.mxu0 %v1176
        %1198 = vmatprep.subr.mxu0 0.0
        %1199 = vmatpush1.msra.mxu0 %v1177
        %1200 = vmatprep.subr.mxu0 0.0
        %1201 = vmatpush1.msra.mxu0 %v1178
        %1202 = vmatprep.subr.mxu0 0.0
        %1203 = vmatpush1.msra.mxu0 %v1179
        %1204 = vmatprep.subr.mxu0 0.0
        %1205 = vmatpush1.msra.mxu0 %v1180
        %1206 = vmatprep.subr.mxu0 0.0
        %1207 = vmatpush1.msra.mxu0 %v1181
        %1208 = vmatprep.subr.mxu0 0.0
        %1209 = vmatpush1.msra.mxu0 %v1182
        %1210 = vmatprep.subr.mxu0 0.0
        %1211 = vmatpush1.msra.mxu0 %v1183
        %1212 = vmatprep.subr.mxu0 0.0
        %1213 = vmatpush1.msra.mxu0 %v1184
        %1214 = vmatprep.subr.mxu0 0.0
        %1215 = vmatpush1.msra.mxu0 %v1185
        %1216 = vmatprep.subr.mxu0 0.0
        %1217 = vmatpush1.msra.mxu0 %v1186
        %1218 = vmatprep.subr.mxu0 0.0
        %1219 = vmatpush1.msra.mxu0 %v1187
        %1220 = vmatprep.subr.mxu0 0.0
        %1221 = vmatpush1.msra.mxu0 0.0
        %1222 = vmatprep.subr.mxu0 0.0
        %1223 = vmatpush1.msra.mxu0 0.0
        %1224 = vmatprep.subr.mxu0 0.0
        %1225 = vmatpush1.msra.mxu0 0.0
        %1226 = vmatprep.subr.mxu0 0.0
        %1227 = vmatpush1.msra.mxu0 0.0
        %1228 = vmatprep.subr.mxu0 0.0
        %1229 = vmatpush1.msra.mxu0 0.0
        %1230 = vmatprep.subr.mxu0 0.0
        %1231 = vmatpush1.msra.mxu0 0.0
        %1232 = vmatprep.subr.mxu0 0.0
        %1233 = vmatpush1.msra.mxu0 0.0
        %1234 = vmatprep.subr.mxu0 0.0
        %1235 = vmatpush1.msra.mxu0 0.0
        %1236 = vmatprep.subr.mxu0 0.0
        %1237 = vmatpush1.msra.mxu0 0.0
        %1238 = vmatprep.subr.mxu0 0.0
        %1239 = vmatpush1.msra.mxu0 0.0
        %1240 = vmatprep.subr.mxu0 0.0
        %1241 = vmatpush1.msra.mxu0 0.0
        %1242 = vmatprep.subr.mxu0 0.0
        %1243 = vmatpush1.msra.mxu0 0.0
        %1244 = vmatprep.subr.mxu0 0.0
        %1245 = vmatpush1.msra.mxu0 0.0
        %1246 = vmatprep.subr.mxu0 0.0
        %1247 = vmatpush1.msra.mxu0 0.0
        %1248 = vmatprep.subr.mxu0 0.0
        %1249 = vmatpush1.msra.mxu0 0.0
        %1250 = vmatprep.subr.mxu0 0.0
        %1251 = vmatpush1.msra.mxu0 0.0
        %1252 = vmatprep.mubr.f32.mxu0 0.0
        %1253 = vmatmul.mubr.f32.gmra.mrb[0].mxu0 %v1171
        %v1254 = vpop.f32.mrb[0].mxu0
        %v1255 = vadd.f32 0.0, %v1254
        %v1256 = vpop.f32.mrb[0].mxu0
        %1257 = vdwg.mxu0
        %1258 = vmatprep.subr.mxu0 0.0
        %1259 = vmatpush1.msra.mxu0 %v1135
        %1260 = vmatprep.subr.mxu0 0.0
        %1261 = vmatpush1.msra.mxu0 %v1136
        %1262 = vmatprep.subr.mxu0 0.0
        %1263 = vmatpush1.msra.mxu0 %v1137
        %1264 = vmatprep.subr.mxu0 0.0
        %1265 = vmatpush1.msra.mxu0 %v1138
        %1266 = vmatprep.subr.mxu0 0.0
        %1267 = vmatpush1.msra.mxu0 %v1139
        %1268 = vmatprep.subr.mxu0 0.0
        %1269 = vmatpush1.msra.mxu0 %v1140
        %1270 = vmatprep.subr.mxu0 0.0
        %1271 = vmatpush1.msra.mxu0 %v1141
        %1272 = vmatprep.subr.mxu0 0.0
        %1273 = vmatpush1.msra.mxu0 %v1142
        %1274 = vmatprep.subr.mxu0 0.0
        %1275 = vmatpush1.msra.mxu0 %v1143
        %1276 = vmatprep.subr.mxu0 0.0
        %1277 = vmatpush1.msra.mxu0 %v1144
        %1278 = vmatprep.subr.mxu0 0.0
        %1279 = vmatpush1.msra.mxu0 %v1145
        %1280 = vmatprep.subr.mxu0 0.0
        %1281 = vmatpush1.msra.mxu0 %v1146
        %1282 = vmatprep.subr.mxu0 0.0
        %1283 = vmatpush1.msra.mxu0 %v1147
        %1284 = vmatprep.subr.mxu0 0.0
        %1285 = vmatpush1.msra.mxu0 %v1148
        %1286 = vmatprep.subr.mxu0 0.0
        %1287 = vmatpush1.msra.mxu0 %v1149
        %1288 = vmatprep.subr.mxu0 0.0
        %1289 = vmatpush1.msra.mxu0 %v1150
        %1290 = vmatprep.subr.mxu0 0.0
        %1291 = vmatpush1.msra.mxu0 0.0
        %1292 = vmatprep.subr.mxu0 0.0
        %1293 = vmatpush1.msra.mxu0 0.0
        %1294 = vmatprep.subr.mxu0 0.0
        %1295 = vmatpush1.msra.mxu0 0.0
        %1296 = vmatprep.subr.mxu0 0.0
        %1297 = vmatpush1.msra.mxu0 0.0
        %1298 = vmatprep.subr.mxu0 0.0
        %1299 = vmatpush1.msra.mxu0 0.0
        %1300 = vmatprep.subr.mxu0 0.0
        %1301 = vmatpush1.msra.mxu0 0.0
        %1302 = vmatprep.subr.mxu0 0.0
        %1303 = vmatpush1.msra.mxu0 0.0
        %1304 = vmatprep.subr.mxu0 0.0
        %1305 = vmatpush1.msra.mxu0 0.0
        %1306 = vmatprep.subr.mxu0 0.0
        %1307 = vmatpush1.msra.mxu0 0.0
        %1308 = vmatprep.subr.mxu0 0.0
        %1309 = vmatpush1.msra.mxu0 0.0
        %1310 = vmatprep.subr.mxu0 0.0
        %1311 = vmatpush1.msra.mxu0 0.0
        %1312 = vmatprep.subr.mxu0 0.0
        %1313 = vmatpush1.msra.mxu0 0.0
        %1314 = vmatprep.subr.mxu0 0.0
        %1315 = vmatpush1.msra.mxu0 0.0
        %1316 = vmatprep.subr.mxu0 0.0
        %1317 = vmatpush1.msra.mxu0 0.0
        %1318 = vmatprep.subr.mxu0 0.0
        %1319 = vmatpush1.msra.mxu0 0.0
        %1320 = vmatprep.subr.mxu0 0.0
        %1321 = vmatpush1.msra.mxu0 0.0
        %1322 = vmatprep.mubr.f32.mxu0 0.0
        %1323 = vmatmul.mubr.f32.gmra.mrb[0].mxu0 %v1134
        %v1324 = vpop.f32.mrb[0].mxu0
        %v1325 = vadd.f32 %v1255, %v1324
        %v1326 = vpop.f32.mrb[0].mxu0
        %1327 = vdwg.mxu0
        %1328 = vrot.lane.b32.xlu0 %v1109, 64
        %v1329 = vpop.permute.xlu0 %1328
        %v1330 = vmax.f32 %v1109, %v1329
        %1331 = vrot.lane.b32.xlu0 %v1330, 32
        %v1332 = vpop.permute.xlu0 %1331
        %v1333 = vmax.f32 %v1330, %v1332
        %1334 = vrot.lane.b32.xlu0 %v1333, 16
        %v1335 = vpop.permute.xlu0 %1334
        %v1336 = vmax.f32 %v1333, %v1335
        %1337 = vrot.lane.b32.xlu0 %v1336, 8
        %v1338 = vpop.permute.xlu0 %1337
        %v1339 = vmax.f32 %v1336, %v1338
        %v1340 = vld [vmem:[%s2 + $0x2] sm:$0x1]
        %v1342 = vlaneseq
        %v1343 = vshrl.u32 %v1342, 7
        %v1344 = vsub.s32 0, %v1343
        %v1345 = vrot.slane %v1340, %v1344
        %v1347 = vadd.f32 %v1339, %v1345
        %v1348 = vmax.f32 %v1347, 0.0
        %v1349 = vld [vmem:[%s3 + $0x100] sm:$0xff]
        %v1350 = vld [vmem:[%s3 + $0x108] sm:$0xff]
        %v1351 = vld [vmem:[%s3 + $0x110] sm:$0xff]
        %v1352 = vld [vmem:[%s3 + $0x118] sm:$0xff]
        %v1353 = vld [vmem:[%s3 + $0x120] sm:$0xff]
        %v1354 = vld [vmem:[%s3 + $0x128] sm:$0xff]
        %v1355 = vld [vmem:[%s3 + $0x130] sm:$0xff]
        %v1356 = vld [vmem:[%s3 + $0x138] sm:$0xff]
        %v1357 = vld [vmem:[%s3 + $0x140] sm:$0xff]
        %v1358 = vld [vmem:[%s3 + $0x148] sm:$0xff]
        %v1359 = vld [vmem:[%s3 + $0x150] sm:$0xff]
        %v1360 = vld [vmem:[%s3 + $0x158] sm:$0xff]
        %v1361 = vld [vmem:[%s3 + $0x160] sm:$0xff]
        %v1362 = vld [vmem:[%s3 + $0x168] sm:$0xff]
        %v1363 = vld [vmem:[%s3 + $0x170] sm:$0xff]
        %v1364 = vld [vmem:[%s3 + $0x178] sm:$0xff]
        %1365 = vmatprep.subr.mxu0 0.0
        %1366 = vmatpush1.msra.mxu0 %v1349
        %1367 = vmatprep.subr.mxu0 0.0
        %1368 = vmatpush1.msra.mxu0 %v1350
        %1369 = vmatprep.subr.mxu0 0.0
        %1370 = vmatpush1.msra.mxu0 %v1351
        %1371 = vmatprep.subr.mxu0 0.0
        %1372 = vmatpush1.msra.mxu0 %v1352
        %1373 = vmatprep.subr.mxu0 0.0
        %1374 = vmatpush1.msra.mxu0 %v1353
        %1375 = vmatprep.subr.mxu0 0.0
        %1376 = vmatpush1.msra.mxu0 %v1354
        %1377 = vmatprep.subr.mxu0 0.0
        %1378 = vmatpush1.msra.mxu0 %v1355
        %1379 = vmatprep.subr.mxu0 0.0
        %1380 = vmatpush1.msra.mxu0 %v1356
        %1381 = vmatprep.subr.mxu0 0.0
        %1382 = vmatpush1.msra.mxu0 %v1357
        %1383 = vmatprep.subr.mxu0 0.0
        %1384 = vmatpush1.msra.mxu0 %v1358
        %1385 = vmatprep.subr.mxu0 0.0
        %1386 = vmatpush1.msra.mxu0 %v1359
        %1387 = vmatprep.subr.mxu0 0.0
        %1388 = vmatpush1.msra.mxu0 %v1360
        %1389 = vmatprep.subr.mxu0 0.0
        %1390 = vmatpush1.msra.mxu0 %v1361
        %1391 = vmatprep.subr.mxu0 0.0
        %1392 = vmatpush1.msra.mxu0 %v1362
        %1393 = vmatprep.subr.mxu0 0.0
        %1394 = vmatpush1.msra.mxu0 %v1363
        %1395 = vmatprep.subr.mxu0 0.0
        %1396 = vmatpush1.msra.mxu0 %v1364
        %1397 = vmatprep.subr.mxu0 0.0
        %1398 = vmatpush1.msra.mxu0 0.0
        %1399 = vmatprep.subr.mxu0 0.0
        %1400 = vmatpush1.msra.mxu0 0.0
        %1401 = vmatprep.subr.mxu0 0.0
        %1402 = vmatpush1.msra.mxu0 0.0
        %1403 = vmatprep.subr.mxu0 0.0
        %1404 = vmatpush1.msra.mxu0 0.0
        %1405 = vmatprep.subr.mxu0 0.0
        %1406 = vmatpush1.msra.mxu0 0.0
        %1407 = vmatprep.subr.mxu0 0.0
        %1408 = vmatpush1.msra.mxu0 0.0
        %1409 = vmatprep.subr.mxu0 0.0
        %1410 = vmatpush1.msra.mxu0 0.0
        %1411 = vmatprep.subr.mxu0 0.0
        %1412 = vmatpush1.msra.mxu0 0.0
        %1413 = vmatprep.subr.mxu0 0.0
        %1414 = vmatpush1.msra.mxu0 0.0
        %1415 = vmatprep.subr.mxu0 0.0
        %1416 = vmatpush1.msra.mxu0 0.0
        %1417 = vmatprep.subr.mxu0 0.0
        %1418 = vmatpush1.msra.mxu0 0.0
        %1419 = vmatprep.subr.mxu0 0.0
        %1420 = vmatpush1.msra.mxu0 0.0
        %1421 = vmatprep.subr.mxu0 0.0
        %1422 = vmatpush1.msra.mxu0 0.0
        %1423 = vmatprep.subr.mxu0 0.0
        %1424 = vmatpush1.msra.mxu0 0.0
        %1425 = vmatprep.subr.mxu0 0.0
        %1426 = vmatpush1.msra.mxu0 0.0
        %1427 = vmatprep.subr.mxu0 0.0
        %1428 = vmatpush1.msra.mxu0 0.0
        %1429 = vmatprep.mubr.f32.mxu0 0.0
        %1430 = vmatmul.mubr.f32.gmra.mrb[0].mxu0 %v1348
        %v1431 = vpop.f32.mrb[0].mxu0
        %v1432 = vadd.f32 0.0, %v1431
        %v1433 = vpop.f32.mrb[0].mxu0
        %1434 = vdwg.mxu0
        %v1435 = vadd.f32 %v1325, %v1432
        %v1436 = vld [vmem:[%s4] sm:$0x1]
        %v1438 = vlaneseq
        %v1439 = vshrl.u32 %v1438, 7
        %v1440 = vsub.s32 0, %v1439
        %v1441 = vrot.slane %v1436, %v1440
        %v1443 = vadd.f32 %v1435, %v1441
        %v1444 = vmax.f32 %v1443, 0.0
        %v1445 = vld [vmem:[%s5] sm:$0xff]
        %v1446 = vld [vmem:[%s5 + $0x8] sm:$0xff]
        %v1447 = vld [vmem:[%s5 + $0x10] sm:$0xff]
        %v1448 = vld [vmem:[%s5 + $0x18] sm:$0xff]
        %v1449 = vld [vmem:[%s6] sm:$0x1]
        %v1451 = vlaneseq
        %v1452 = vshrl.u32 %v1451, 7
        %v1453 = vsub.s32 0, %v1452
        %v1454 = vrot.slane %v1449, %v1453
        %vm1456 = vcmask 261120
        %v1458 = vsel %vm1456, %v1444, 0
        %1460 = vmatprep.subr.mxu0 0.0
        %1461 = vmatpush1.msra.mxu0 %v1445
        %1462 = vmatprep.subr.mxu0 0.0
        %1463 = vmatpush1.msra.mxu0 %v1446
        %1464 = vmatprep.subr.mxu0 0.0
        %1465 = vmatpush1.msra.mxu0 %v1447
        %1466 = vmatprep.subr.mxu0 0.0
        %1467 = vmatpush1.msra.mxu0 %v1448
        %1468 = vmatprep.subr.mxu0 0.0
        %1469 = vmatpush1.msra.mxu0 0.0
        %1470 = vmatprep.subr.mxu0 0.0
        %1471 = vmatpush1.msra.mxu0 0.0
        %1472 = vmatprep.subr.mxu0 0.0
        %1473 = vmatpush1.msra.mxu0 0.0
        %1474 = vmatprep.subr.mxu0 0.0
        %1475 = vmatpush1.msra.mxu0 0.0
        %1476 = vmatprep.subr.mxu0 0.0
        %1477 = vmatpush1.msra.mxu0 0.0
        %1478 = vmatprep.subr.mxu0 0.0
        %1479 = vmatpush1.msra.mxu0 0.0
        %1480 = vmatprep.subr.mxu0 0.0
        %1481 = vmatpush1.msra.mxu0 0.0
        %1482 = vmatprep.subr.mxu0 0.0
        %1483 = vmatpush1.msra.mxu0 0.0
        %1484 = vmatprep.subr.mxu0 0.0
        %1485 = vmatpush1.msra.mxu0 0.0
        %1486 = vmatprep.subr.mxu0 0.0
        %1487 = vmatpush1.msra.mxu0 0.0
        %1488 = vmatprep.subr.mxu0 0.0
        %1489 = vmatpush1.msra.mxu0 0.0
        %1490 = vmatprep.subr.mxu0 0.0
        %1491 = vmatpush1.msra.mxu0 0.0
        %1492 = vmatprep.subr.mxu0 0.0
        %1493 = vmatpush1.msra.mxu0 0.0
        %1494 = vmatprep.subr.mxu0 0.0
        %1495 = vmatpush1.msra.mxu0 0.0
        %1496 = vmatprep.subr.mxu0 0.0
        %1497 = vmatpush1.msra.mxu0 0.0
        %1498 = vmatprep.subr.mxu0 0.0
        %1499 = vmatpush1.msra.mxu0 0.0
        %1500 = vmatprep.subr.mxu0 0.0
        %1501 = vmatpush1.msra.mxu0 0.0
        %1502 = vmatprep.subr.mxu0 0.0
        %1503 = vmatpush1.msra.mxu0 0.0
        %1504 = vmatprep.subr.mxu0 0.0
        %1505 = vmatpush1.msra.mxu0 0.0
        %1506 = vmatprep.subr.mxu0 0.0
        %1507 = vmatpush1.msra.mxu0 0.0
        %1508 = vmatprep.subr.mxu0 0.0
        %1509 = vmatpush1.msra.mxu0 0.0
        %1510 = vmatprep.subr.mxu0 0.0
        %1511 = vmatpush1.msra.mxu0 0.0
        %1512 = vmatprep.subr.mxu0 0.0
        %1513 = vmatpush1.msra.mxu0 0.0
        %1514 = vmatprep.subr.mxu0 0.0
        %1515 = vmatpush1.msra.mxu0 0.0
        %1516 = vmatprep.subr.mxu0 0.0
        %1517 = vmatpush1.msra.mxu0 0.0
        %1518 = vmatprep.subr.mxu0 0.0
        %1519 = vmatpush1.msra.mxu0 0.0
        %1520 = vmatprep.subr.mxu0 0.0
        %1521 = vmatpush1.msra.mxu0 0.0
        %1522 = vmatprep.subr.mxu0 0.0
        %1523 = vmatpush1.msra.mxu0 0.0
        %1524 = vmatprep.mubr.f32.mxu0 0.0
        %1525 = vmatmul.mubr.f32.gmra.mrb[0].mxu0 %v1458
        %v1526 = vpop.f32.mrb[0].mxu0
        %v1527 = vadd.f32 %v1454, %v1526
        %v1528 = vpop.f32.mrb[0].mxu0
        %1529 = vdwg.mxu0
        %vm1530 = vcmask 64512
        %1531 = vst.msk [vmem:[%s291] sm:$0xff] %vm1530, %v1527
        %p1532 = scmp.lt.s32.totalorder %s19, 1
        %s1533 = scalar_select %p1532, %s19, 1
        %s1534 = smul.addr %s1533, 8
        %s1535 = scalar_lea.vmem %s7, %s1534
        // Predicated region
        $region53: #{tpu_custom_call.1} parent=47 // pred_check
          %p1536 = pneg %p189
        $region54: #{tpu_custom_call.1} parent=47 // pred_check_branch
          %1538 = sbr.rel (%p1536) target = $region56
        $region55: #{tpu_custom_call.1} parent=47 // pred_region
          _
        $region56: #{tpu_custom_call.1} parent=47 // pred_fallthru
          _
      $region48: #{tpu_custom_call.1} parent=5 // pred_fallthru
        _
      %p1539 = scmp.le.s32.totalorder 2, %s14
      // Predicated region
      $region57: #{tpu_custom_call.1} parent=5 // pred_check
        %p1540 = pneg %p1539
      $region58: #{tpu_custom_call.1} parent=5 // pred_check_branch
        %1542 = sbr.rel (%p1540) target = $region60
      $region59: #{tpu_custom_call.1} parent=5 // pred_region
        %s1543 = ssub.s32 %s14, 2
        // Predicated region
        $region61: #{tpu_custom_call.1} parent=59 // pred_check
          %p1544 = pneg %p195
        $region62: #{tpu_custom_call.1} parent=59 // pred_check_branch
          %1546 = sbr.rel (%p1544) target = $region64
        $region63: #{tpu_custom_call.1} parent=59 // pred_region
          %p1547 = scmp.lt.s32.totalorder %s20, 1
          %s1548 = scalar_select %p1547, %s20, 1
          %s1549 = smul.addr %s1548, 8
          %s1550 = scalar_lea.vmem %s7, %s1549
        $region64: #{tpu_custom_call.1} parent=59 // pred_fallthru
          _
      $region60: #{tpu_custom_call.1} parent=5 // pred_fallthru
        _
    $region6: #{tpu_custom_call.1} parent=1 // loop_footer
      %s18 = sadd.s32 1, %s14
    $region7: #{tpu_custom_call.1} parent=1 // loop_footer_branch
      %13 = sbr.rel target = $region3
    $region8: #{tpu_custom_call.1} parent=1 // loop_exit
      _
    %1551 = vsyncpa [#allocation3], 1
    %s1552 = scalar_lea.sflag [#allocation3], 1
    %1553 = vsyncpa %s1552, 1

</llo_original>
